<compile_context>
chip_gen: v5e
topology: v5e:2x2
jax: 0.10.0
libtpu: 0.0.40
codegen_flags: <defaults>
</compile_context>

<pallas_src>
import functools

import jax
import jax.numpy as jnp
from jax.experimental import pallas as pl
from jax.experimental.pallas import tpu as pltpu

LANE = 128          # TPU lane width; Cout / output dims padded to this for MXU
BN_EPS = 1e-5


# ----------------------------- Pallas kernels ------------------------------ #

def _conv_bn_relu_kernel(cols_ref, w_ref, gamma_ref, beta_ref, o_ref):
    """Fused im2col-GEMM + BatchNorm(batch stats) + ReLU.

    cols:  [M, Kp]   bf16  (im2col patches, Kp = K padded to 128/256 multiple)
    w:     [Kp, 128] bf16  (pre-packed conv weight, Cout zero-padded to 128)
    gamma/beta: [1, 128] f32 (zero-padded past the real Cout)
    out:   [M, Cout] bf16  (real channel count only, so the next layer's K stays
                            small -- no 128-padded activation leaves the kernel)
    Conv bias omitted: training-mode BN subtracts the batch mean, cancelling it.
    """
    x = jnp.dot(cols_ref[...], w_ref[...], preferred_element_type=jnp.float32)
    inv_m = 1.0 / x.shape[0]
    mean = jnp.sum(x, axis=0, keepdims=True) * inv_m
    xc = x - mean                                  # centered -> robust variance
    var = jnp.sum(xc * xc, axis=0, keepdims=True) * inv_m   # biased, as PyTorch
    scale = jax.lax.rsqrt(var + BN_EPS) * gamma_ref[...]
    y = jnp.maximum(xc * scale + beta_ref[...], 0.0)
    o_ref[...] = y[:, : o_ref.shape[1]].astype(o_ref.dtype)


def _conv_bn_relu_head_kernel(cols_ref, w_ref, gamma_ref, beta_ref,
                              wh_ref, bh_ref, o_ref):
    """Layer-3 conv+BN+ReLU fused with the Linear head.

    cols rows are ordered spatial-major: row = s*N + n  (s = oh*Wo + ow), so the
    flattened-feature matmul decomposes into S static, contiguous row-block
    matmuls against the per-position head weight wh[s] -- no reshape needed.
      cols: [S*N, Kp] bf16,  w: [Kp, 128] bf16,  gamma/beta: [1, 128] f32
      wh:   [S, 128, 128] bf16 (rows: padded conv3 channels; cols: padded outputs)
      bh:   [1, 128] f32
      out:  [N, 128] f32  (caller slices [:, :outputs])
    """
    x = jnp.dot(cols_ref[...], w_ref[...], preferred_element_type=jnp.float32)
    inv_m = 1.0 / x.shape[0]
    mean = jnp.sum(x, axis=0, keepdims=True) * inv_m
    xc = x - mean
    var = jnp.sum(xc * xc, axis=0, keepdims=True) * inv_m
    scale = jax.lax.rsqrt(var + BN_EPS) * gamma_ref[...]
    y = jnp.maximum(xc * scale + beta_ref[...], 0.0)    # padded channels stay 0

    n = o_ref.shape[0]
    out = jnp.zeros(o_ref.shape, jnp.float32)
    for s in range(wh_ref.shape[0]):                    # S is small and static
        out = out + jnp.dot(y[s * n:(s + 1) * n, :].astype(wh_ref.dtype),
                            wh_ref[s], preferred_element_type=jnp.float32)
    o_ref[...] = out + bh_ref[...]


# ------------------------------ call wrappers ------------------------------- #

def _vmem_specs(n):
    return [pl.BlockSpec(memory_space=pltpu.MemorySpace.VMEM) for _ in range(n)]


def _nbytes(*arrays):
    return int(sum(a.size * a.dtype.itemsize for a in arrays))


def fused_conv_bn_relu(cols, w, gamma, beta, cout):
    m, kp = cols.shape
    c = w.shape[1]
    cost = pl.CostEstimate(
        flops=2 * m * kp * c + 8 * m * c,
        transcendentals=c,
        bytes_accessed=_nbytes(cols, w, gamma, beta) + m * cout * 2)
    return pl.pallas_call(
        _conv_bn_relu_kernel,
        out_shape=jax.ShapeDtypeStruct((m, cout), jnp.bfloat16),
        in_specs=_vmem_specs(4),
        out_specs=pl.BlockSpec(memory_space=pltpu.MemorySpace.VMEM),
        cost_estimate=cost,
    )(cols, w, gamma, beta)


def fused_conv_bn_relu_head(cols, w, gamma, beta, wh, bh, n):
    m, kp = cols.shape
    c = w.shape[1]
    s = wh.shape[0]
    cost = pl.CostEstimate(
        flops=2 * m * kp * c + 8 * m * c + 2 * s * n * c * wh.shape[2],
        transcendentals=c,
        bytes_accessed=_nbytes(cols, w, gamma, beta, wh, bh) + n * LANE * 4)
    return pl.pallas_call(
        _conv_bn_relu_head_kernel,
        out_shape=jax.ShapeDtypeStruct((n, LANE), jnp.float32),
        in_specs=_vmem_specs(6),
        out_specs=pl.BlockSpec(memory_space=pltpu.MemorySpace.VMEM),
        cost_estimate=cost,
    )(cols, w, gamma, beta, wh, bh)


# ------------------------------- JAX glue ---------------------------------- #

def conv2d_size_out(size, kernel_size=5, stride=2):
    return (size - (kernel_size - 1) - 1) // stride + 1


def _round_up(x, m):
    return (x + m - 1) // m * m


def _k_target(k):
    # v6e/v7x MXUs are 256 deep: round K up to 256 multiples once K > 128.
    return 128 if k <= 128 else _round_up(k, 256)


def im2col(x_nhwc, k=5, stride=2, spatial_major=False):
    """[N,H,W,C] -> ([rows, k*k*C], Ho, Wo); columns ordered (ki, kj, c).

    spatial_major=False: rows ordered (n, oh, ow)  (conv layers 1/2).
    spatial_major=True:  rows ordered (oh, ow, n)  (layer 3, so the fused head
                         sees each spatial position as a contiguous row block).
    """
    n, h, w, c = x_nhwc.shape
    ho = (h - k) // stride + 1
    wo = (w - k) // stride + 1
    patches = [
        x_nhwc[:, i:i + stride * ho:stride, j:j + stride * wo:stride, :]
        for i in range(k) for j in range(k)
    ]
    p = jnp.stack(patches, axis=3)                     # [N, Ho, Wo, k*k, C]
    if spatial_major:
        p = jnp.transpose(p, (1, 2, 0, 3, 4))          # [Ho, Wo, N, k*k, C]
    return p.reshape(-1, k * k * c), ho, wo


def _pad_cols(cols, k_pad):
    k = cols.shape[1]
    if k == k_pad:
        return cols
    return jnp.pad(cols, ((0, 0), (0, k_pad - k)))


# --------------------------- weight pre-packing ----------------------------- #

def _pack_conv_weight(w_pt):
    """[Cout, Cin, kh, kw] -> [k_target(kh*kw*Cin), 128] bf16; rows (kh,kw,cin)."""
    cout, cin, kh, kw = w_pt.shape
    k = kh * kw * cin
    w = jnp.transpose(w_pt, (2, 3, 1, 0)).reshape(k, cout)
    w = jnp.pad(w, ((0, _k_target(k) - k), (0, LANE - cout)))
    return w.astype(jnp.bfloat16)


def _pack_bn(gamma, beta):
    c = gamma.shape[0]
    g = jnp.pad(gamma, (0, LANE - c)).reshape(1, LANE).astype(jnp.float32)
    b = jnp.pad(beta, (0, LANE - c)).reshape(1, LANE).astype(jnp.float32)
    return g, b


def _pack_head(wh, bh, convh, convw, cin, outputs):
    """Fold PyTorch's (c,h,w) flatten into a per-spatial-position weight stack.

    wh: [outputs, cin*convh*convw]  ->  [convh*convw, 128, 128] bf16
    """
    whT = wh.T.reshape(cin, convh, convw, outputs)      # rows in (c, h, w) order
    whT = jnp.transpose(whT, (1, 2, 0, 3))              # (h, w, c, out)
    whT = whT.reshape(convh * convw, cin, outputs)
    whT = jnp.pad(whT, ((0, 0), (0, LANE - cin), (0, LANE - outputs)))
    bhp = jnp.pad(bh, (0, LANE - outputs)).reshape(1, LANE).astype(jnp.float32)
    return whT.astype(jnp.bfloat16), bhp


def pack_params(params, h, w, outputs):
    """One-time pre-packing: transposes / pads / bf16 casts leave the hot path."""
    convw = conv2d_size_out(conv2d_size_out(conv2d_size_out(w)))
    convh = conv2d_size_out(conv2d_size_out(conv2d_size_out(h)))
    g1, be1 = _pack_bn(params["g1"], params["be1"])
    g2, be2 = _pack_bn(params["g2"], params["be2"])
    g3, be3 = _pack_bn(params["g3"], params["be3"])
    wh, bh = _pack_head(params["wh"], params["bh"], convh, convw, 32, outputs)
    return {
        # b1/b2/b3 intentionally dropped: cancelled exactly by train-mode BN.
        "w1": _pack_conv_weight(params["w1"]),   # [128, 128]   (K = 75)
        "w2": _pack_conv_weight(params["w2"]),   # [512, 128]   (K = 400, Cin=16)
        "w3": _pack_conv_weight(params["w3"]),   # [1024, 128]  (K = 800, Cin=32)
        "g1": g1, "be1": be1, "g2": g2, "be2": be2, "g3": g3, "be3": be3,
        "wh": wh, "bh": bh,
    }


def init_params(key, h, w, outputs):
    convw = conv2d_size_out(conv2d_size_out(conv2d_size_out(w)))
    convh = conv2d_size_out(conv2d_size_out(conv2d_size_out(h)))
    lin_in = convw * convh * 32
    ks = jax.random.split(key, 8)
    return {
        "w1": 0.05 * jax.random.normal(ks[0], (16, 3, 5, 5), jnp.float32),
        "b1": 0.01 * jax.random.normal(ks[1], (16,), jnp.float32),
        "g1": jnp.ones((16,), jnp.float32),
        "be1": jnp.zeros((16,), jnp.float32),
        "w2": 0.05 * jax.random.normal(ks[2], (32, 16, 5, 5), jnp.float32),
        "b2": 0.01 * jax.random.normal(ks[3], (32,), jnp.float32),
        "g2": jnp.ones((32,), jnp.float32),
        "be2": jnp.zeros((32,), jnp.float32),
        "w3": 0.05 * jax.random.normal(ks[4], (32, 32, 5, 5), jnp.float32),
        "b3": 0.01 * jax.random.normal(ks[5], (32,), jnp.float32),
        "g3": jnp.ones((32,), jnp.float32),
        "be3": jnp.zeros((32,), jnp.float32),
        "wh": 0.05 * jax.random.normal(ks[6], (outputs, lin_in), jnp.float32),
        "bh": 0.01 * jax.random.normal(ks[7], (outputs,), jnp.float32),
    }


# -------------------------------- forward ----------------------------------- #

@functools.partial(jax.jit, static_argnames="outputs")
def dqn_forward(packed, x_nchw, *, outputs):
    """x_nchw: [N, 3, H, W] f32 -> [N, outputs] f32 (train-mode BN forward)."""
    n = x_nchw.shape[0]
    x = jnp.transpose(x_nchw, (0, 2, 3, 1)).astype(jnp.bfloat16)   # NHWC, once

    # conv1 + bn1 + relu                                   [N,18,18,16]
    cols, ho, wo = im2col(x)
    cols = _pad_cols(cols, packed["w1"].shape[0])
    x = fused_conv_bn_relu(cols, packed["w1"], packed["g1"], packed["be1"],
                           cout=16).reshape(n, ho, wo, 16)

    # conv2 + bn2 + relu                                   [N, 7, 7,32]
    cols, ho, wo = im2col(x)
    cols = _pad_cols(cols, packed["w2"].shape[0])
    x = fused_conv_bn_relu(cols, packed["w2"], packed["g2"], packed["be2"],
                           cout=32).reshape(n, ho, wo, 32)

    # conv3 + bn3 + relu + Linear head (single fused kernel)
    cols, ho, wo = im2col(x, spatial_major=True)
    cols = _pad_cols(cols, packed["w3"].shape[0])
    out = fused_conv_bn_relu_head(cols, packed["w3"], packed["g3"],
                                  packed["be3"], packed["wh"], packed["bh"], n=n)
    return out[:, :outputs]


# ---------------------------------- main ------------------------------------ #

if __name__ == "__main__":
    key = jax.random.PRNGKey(0)
    kx, kp = jax.random.split(key)

    batch, h, w, outputs = 2, 40, 40, 4
    x = jax.random.normal(kx, (batch, 3, h, w), jnp.float32)   # NCHW, as PyTorch

    params = init_params(kp, h, w, outputs)
    packed = pack_params(params, h, w, outputs)                # one-time prep
    out = dqn_forward(packed, x, outputs=outputs)
    out = jax.block_until_ready(out)

    assert out.shape == (batch, outputs), out.shape
    assert bool(jnp.isfinite(out).all())
    print("KERNEL_OK")
</pallas_src>

<mosaic_0001>
module attributes {stable_mosaic.version = 11 : i64} {
  func.func @_conv_bn_relu_kernel(%arg0: memref<648x128xbf16, #tpu.memory_space<vmem>>, %arg1: memref<128x128xbf16, #tpu.memory_space<vmem>>, %arg2: memref<1x128xf32, #tpu.memory_space<vmem>>, %arg3: memref<1x128xf32, #tpu.memory_space<vmem>>, %arg4: memref<648x16xbf16, #tpu.memory_space<vmem>>) attributes {dimension_semantics = [], scalar_prefetch = 0 : i64, scratch_operands = 0 : i64, tpu.core_type = #tpu.core_type<tc>} {
    %c0 = arith.constant 0 : index
    %c0_0 = arith.constant 0 : index
    %0 = vector.load %arg0[%c0, %c0_0] : memref<648x128xbf16, #tpu.memory_space<vmem>>, vector<648x128xbf16>
    %c0_1 = arith.constant 0 : index
    %c0_2 = arith.constant 0 : index
    %1 = vector.load %arg1[%c0_1, %c0_2] : memref<128x128xbf16, #tpu.memory_space<vmem>>, vector<128x128xbf16>
    %cst = arith.constant dense<0.000000e+00> : vector<648x128xf32>
    %2 = tpu.matmul %0, %1, %cst {dimension_numbers = #tpu.dot_dimension_numbers<[1], [0], [0], [1], [0, 0, 1, 1], [], []>} : vector<648x128xbf16>, vector<128x128xbf16>, vector<648x128xf32> -> vector<648x128xf32>
    %cst_3 = arith.constant dense<0.000000e+00> : vector<128xf32>
    %3 = vector.multi_reduction <add>, %2, %cst_3 [0] : vector<648x128xf32> to vector<128xf32>
    %4 = vector.shape_cast %3 : vector<128xf32> to vector<1x128xf32>
    %cst_4 = arith.constant 0.00154320989 : f32
    %5 = vector.broadcast %cst_4 : f32 to vector<1x128xf32>
    %6 = arith.mulf %4, %5 : vector<1x128xf32>
    %7 = vector.broadcast %6 : vector<1x128xf32> to vector<648x128xf32>
    %8 = arith.subf %2, %7 : vector<648x128xf32>
    %9 = arith.mulf %8, %8 : vector<648x128xf32>
    %cst_5 = arith.constant dense<0.000000e+00> : vector<128xf32>
    %10 = vector.multi_reduction <add>, %9, %cst_5 [0] : vector<648x128xf32> to vector<128xf32>
    %11 = vector.shape_cast %10 : vector<128xf32> to vector<1x128xf32>
    %cst_6 = arith.constant 0.00154320989 : f32
    %12 = vector.broadcast %cst_6 : f32 to vector<1x128xf32>
    %13 = arith.mulf %11, %12 : vector<1x128xf32>
    %cst_7 = arith.constant 9.99999974E-6 : f32
    %14 = vector.broadcast %cst_7 : f32 to vector<1x128xf32>
    %15 = arith.addf %13, %14 : vector<1x128xf32>
    %16 = math.rsqrt %15 : vector<1x128xf32>
    %c0_8 = arith.constant 0 : index
    %c0_9 = arith.constant 0 : index
    %17 = vector.load %arg2[%c0_8, %c0_9] : memref<1x128xf32, #tpu.memory_space<vmem>>, vector<1x128xf32>
    %18 = arith.mulf %16, %17 : vector<1x128xf32>
    %19 = vector.broadcast %18 : vector<1x128xf32> to vector<648x128xf32>
    %20 = arith.mulf %8, %19 : vector<648x128xf32>
    %c0_10 = arith.constant 0 : index
    %c0_11 = arith.constant 0 : index
    %21 = vector.load %arg3[%c0_10, %c0_11] : memref<1x128xf32, #tpu.memory_space<vmem>>, vector<1x128xf32>
    %22 = vector.broadcast %21 : vector<1x128xf32> to vector<648x128xf32>
    %23 = arith.addf %20, %22 : vector<648x128xf32>
    %cst_12 = arith.constant 0.000000e+00 : f32
    %24 = vector.broadcast %cst_12 : f32 to vector<648x128xf32>
    %25 = arith.maximumf %23, %24 : vector<648x128xf32>
    %26 = vector.extract_strided_slice %25 {offsets = [0, 0], sizes = [648, 16], strides = [1, 1]} : vector<648x128xf32> to vector<648x16xf32>
    %27 = arith.truncf %26 : vector<648x16xf32> to vector<648x16xbf16>
    %c0_13 = arith.constant 0 : index
    %c0_14 = arith.constant 0 : index
    %28 = vector.load %arg4[%c0_13, %c0_14] : memref<648x16xbf16, #tpu.memory_space<vmem>>, vector<648x16xbf16>
    tpu.vector_store %arg4[%c0_13, %c0_14], %27 {strides = array<i32>} : memref<648x16xbf16, #tpu.memory_space<vmem>>, vector<648x16xbf16>,
    return
  }
}

module attributes {stable_mosaic.version = 11 : i64} {
  func.func @_conv_bn_relu_kernel(%arg0: memref<98x512xbf16, #tpu.memory_space<vmem>>, %arg1: memref<512x128xbf16, #tpu.memory_space<vmem>>, %arg2: memref<1x128xf32, #tpu.memory_space<vmem>>, %arg3: memref<1x128xf32, #tpu.memory_space<vmem>>, %arg4: memref<98x32xbf16, #tpu.memory_space<vmem>>) attributes {dimension_semantics = [], scalar_prefetch = 0 : i64, scratch_operands = 0 : i64, tpu.core_type = #tpu.core_type<tc>} {
    %c0 = arith.constant 0 : index
    %c0_0 = arith.constant 0 : index
    %0 = vector.load %arg0[%c0, %c0_0] : memref<98x512xbf16, #tpu.memory_space<vmem>>, vector<98x512xbf16>
    %c0_1 = arith.constant 0 : index
    %c0_2 = arith.constant 0 : index
    %1 = vector.load %arg1[%c0_1, %c0_2] : memref<512x128xbf16, #tpu.memory_space<vmem>>, vector<512x128xbf16>
    %cst = arith.constant dense<0.000000e+00> : vector<98x128xf32>
    %2 = tpu.matmul %0, %1, %cst {dimension_numbers = #tpu.dot_dimension_numbers<[1], [0], [0], [1], [0, 0, 1, 1], [], []>} : vector<98x512xbf16>, vector<512x128xbf16>, vector<98x128xf32> -> vector<98x128xf32>
    %cst_3 = arith.constant dense<0.000000e+00> : vector<128xf32>
    %3 = vector.multi_reduction <add>, %2, %cst_3 [0] : vector<98x128xf32> to vector<128xf32>
    %4 = vector.shape_cast %3 : vector<128xf32> to vector<1x128xf32>
    %cst_4 = arith.constant 0.0102040814 : f32
    %5 = vector.broadcast %cst_4 : f32 to vector<1x128xf32>
    %6 = arith.mulf %4, %5 : vector<1x128xf32>
    %7 = vector.broadcast %6 : vector<1x128xf32> to vector<98x128xf32>
    %8 = arith.subf %2, %7 : vector<98x128xf32>
    %9 = arith.mulf %8, %8 : vector<98x128xf32>
    %cst_5 = arith.constant dense<0.000000e+00> : vector<128xf32>
    %10 = vector.multi_reduction <add>, %9, %cst_5 [0] : vector<98x128xf32> to vector<128xf32>
    %11 = vector.shape_cast %10 : vector<128xf32> to vector<1x128xf32>
    %cst_6 = arith.constant 0.0102040814 : f32
    %12 = vector.broadcast %cst_6 : f32 to vector<1x128xf32>
    %13 = arith.mulf %11, %12 : vector<1x128xf32>
    %cst_7 = arith.constant 9.99999974E-6 : f32
    %14 = vector.broadcast %cst_7 : f32 to vector<1x128xf32>
    %15 = arith.addf %13, %14 : vector<1x128xf32>
    %16 = math.rsqrt %15 : vector<1x128xf32>
    %c0_8 = arith.constant 0 : index
    %c0_9 = arith.constant 0 : index
    %17 = vector.load %arg2[%c0_8, %c0_9] : memref<1x128xf32, #tpu.memory_space<vmem>>, vector<1x128xf32>
    %18 = arith.mulf %16, %17 : vector<1x128xf32>
    %19 = vector.broadcast %18 : vector<1x128xf32> to vector<98x128xf32>
    %20 = arith.mulf %8, %19 : vector<98x128xf32>
    %c0_10 = arith.constant 0 : index
    %c0_11 = arith.constant 0 : index
    %21 = vector.load %arg3[%c0_10, %c0_11] : memref<1x128xf32, #tpu.memory_space<vmem>>, vector<1x128xf32>
    %22 = vector.broadcast %21 : vector<1x128xf32> to vector<98x128xf32>
    %23 = arith.addf %20, %22 : vector<98x128xf32>
    %cst_12 = arith.constant 0.000000e+00 : f32
    %24 = vector.broadcast %cst_12 : f32 to vector<98x128xf32>
    %25 = arith.maximumf %23, %24 : vector<98x128xf32>
    %26 = vector.extract_strided_slice %25 {offsets = [0, 0], sizes = [98, 32], strides = [1, 1]} : vector<98x128xf32> to vector<98x32xf32>
    %27 = arith.truncf %26 : vector<98x32xf32> to vector<98x32xbf16>
    %c0_13 = arith.constant 0 : index
    %c0_14 = arith.constant 0 : index
    %28 = vector.load %arg4[%c0_13, %c0_14] : memref<98x32xbf16, #tpu.memory_space<vmem>>, vector<98x32xbf16>
    tpu.vector_store %arg4[%c0_13, %c0_14], %27 {strides = array<i32>} : memref<98x32xbf16, #tpu.memory_space<vmem>>, vector<98x32xbf16>,
    return
  }
}

module attributes {stable_mosaic.version = 11 : i64} {
  func.func @_conv_bn_relu_head_kernel(%arg0: memref<8x1024xbf16, #tpu.memory_space<vmem>>, %arg1: memref<1024x128xbf16, #tpu.memory_space<vmem>>, %arg2: memref<1x128xf32, #tpu.memory_space<vmem>>, %arg3: memref<1x128xf32, #tpu.memory_space<vmem>>, %arg4: memref<4x128x128xbf16, #tpu.memory_space<vmem>>, %arg5: memref<1x128xf32, #tpu.memory_space<vmem>>, %arg6: memref<2x128xf32, #tpu.memory_space<vmem>>) attributes {dimension_semantics = [], scalar_prefetch = 0 : i64, scratch_operands = 0 : i64, tpu.core_type = #tpu.core_type<tc>} {
    %c0 = arith.constant 0 : index
    %c0_0 = arith.constant 0 : index
    %0 = vector.load %arg0[%c0, %c0_0] : memref<8x1024xbf16, #tpu.memory_space<vmem>>, vector<8x1024xbf16>
    %c0_1 = arith.constant 0 : index
    %c0_2 = arith.constant 0 : index
    %1 = vector.load %arg1[%c0_1, %c0_2] : memref<1024x128xbf16, #tpu.memory_space<vmem>>, vector<1024x128xbf16>
    %cst = arith.constant dense<0.000000e+00> : vector<8x128xf32>
    %2 = tpu.matmul %0, %1, %cst {dimension_numbers = #tpu.dot_dimension_numbers<[1], [0], [0], [1], [0, 0, 1, 1], [], []>} : vector<8x1024xbf16>, vector<1024x128xbf16>, vector<8x128xf32> -> vector<8x128xf32>
    %cst_3 = arith.constant dense<0.000000e+00> : vector<128xf32>
    %3 = vector.multi_reduction <add>, %2, %cst_3 [0] : vector<8x128xf32> to vector<128xf32>
    %4 = vector.shape_cast %3 : vector<128xf32> to vector<1x128xf32>
    %cst_4 = arith.constant 1.250000e-01 : f32
    %5 = vector.broadcast %cst_4 : f32 to vector<1x128xf32>
    %6 = arith.mulf %4, %5 : vector<1x128xf32>
    %7 = vector.broadcast %6 : vector<1x128xf32> to vector<8x128xf32>
    %8 = arith.subf %2, %7 : vector<8x128xf32>
    %9 = arith.mulf %8, %8 : vector<8x128xf32>
    %cst_5 = arith.constant dense<0.000000e+00> : vector<128xf32>
    %10 = vector.multi_reduction <add>, %9, %cst_5 [0] : vector<8x128xf32> to vector<128xf32>
    %11 = vector.shape_cast %10 : vector<128xf32> to vector<1x128xf32>
    %cst_6 = arith.constant 1.250000e-01 : f32
    %12 = vector.broadcast %cst_6 : f32 to vector<1x128xf32>
    %13 = arith.mulf %11, %12 : vector<1x128xf32>
    %cst_7 = arith.constant 9.99999974E-6 : f32
    %14 = vector.broadcast %cst_7 : f32 to vector<1x128xf32>
    %15 = arith.addf %13, %14 : vector<1x128xf32>
    %16 = math.rsqrt %15 : vector<1x128xf32>
    %c0_8 = arith.constant 0 : index
    %c0_9 = arith.constant 0 : index
    %17 = vector.load %arg2[%c0_8, %c0_9] : memref<1x128xf32, #tpu.memory_space<vmem>>, vector<1x128xf32>
    %18 = arith.mulf %16, %17 : vector<1x128xf32>
    %19 = vector.broadcast %18 : vector<1x128xf32> to vector<8x128xf32>
    %20 = arith.mulf %8, %19 : vector<8x128xf32>
    %c0_10 = arith.constant 0 : index
    %c0_11 = arith.constant 0 : index
    %21 = vector.load %arg3[%c0_10, %c0_11] : memref<1x128xf32, #tpu.memory_space<vmem>>, vector<1x128xf32>
    %22 = vector.broadcast %21 : vector<1x128xf32> to vector<8x128xf32>
    %23 = arith.addf %20, %22 : vector<8x128xf32>
    %cst_12 = arith.constant 0.000000e+00 : f32
    %24 = vector.broadcast %cst_12 : f32 to vector<8x128xf32>
    %25 = arith.maximumf %23, %24 : vector<8x128xf32>
    %cst_13 = arith.constant 0.000000e+00 : f32
    %26 = vector.broadcast %cst_13 : f32 to vector<2x128xf32>
    %27 = vector.extract_strided_slice %25 {offsets = [0, 0], sizes = [2, 128], strides = [1, 1]} : vector<8x128xf32> to vector<2x128xf32>
    %28 = arith.truncf %27 : vector<2x128xf32> to vector<2x128xbf16>
    %c0_14 = arith.constant 0 : index
    %c0_15 = arith.constant 0 : index
    %c0_16 = arith.constant 0 : index
    %29 = vector.load %arg4[%c0_14, %c0_15, %c0_16] : memref<4x128x128xbf16, #tpu.memory_space<vmem>>, vector<1x128x128xbf16>
    %30 = vector.shape_cast %29 : vector<1x128x128xbf16> to vector<128x128xbf16>
    %cst_17 = arith.constant dense<0.000000e+00> : vector<2x128xf32>
    %31 = tpu.matmul %28, %30, %cst_17 {dimension_numbers = #tpu.dot_dimension_numbers<[1], [0], [0], [1], [0, 0, 1, 1], [], []>} : vector<2x128xbf16>, vector<128x128xbf16>, vector<2x128xf32> -> vector<2x128xf32>
    %32 = arith.addf %26, %31 : vector<2x128xf32>
    %33 = vector.extract_strided_slice %25 {offsets = [2, 0], sizes = [2, 128], strides = [1, 1]} : vector<8x128xf32> to vector<2x128xf32>
    %34 = arith.truncf %33 : vector<2x128xf32> to vector<2x128xbf16>
    %c1 = arith.constant 1 : index
    %c0_18 = arith.constant 0 : index
    %c0_19 = arith.constant 0 : index
    %35 = vector.load %arg4[%c1, %c0_18, %c0_19] : memref<4x128x128xbf16, #tpu.memory_space<vmem>>, vector<1x128x128xbf16>
    %36 = vector.shape_cast %35 : vector<1x128x128xbf16> to vector<128x128xbf16>
    %cst_20 = arith.constant dense<0.000000e+00> : vector<2x128xf32>
    %37 = tpu.matmul %34, %36, %cst_20 {dimension_numbers = #tpu.dot_dimension_numbers<[1], [0], [0], [1], [0, 0, 1, 1], [], []>} : vector<2x128xbf16>, vector<128x128xbf16>, vector<2x128xf32> -> vector<2x128xf32>
    %38 = arith.addf %32, %37 : vector<2x128xf32>
    %39 = vector.extract_strided_slice %25 {offsets = [4, 0], sizes = [2, 128], strides = [1, 1]} : vector<8x128xf32> to vector<2x128xf32>
    %40 = arith.truncf %39 : vector<2x128xf32> to vector<2x128xbf16>
    %c2 = arith.constant 2 : index
    %c0_21 = arith.constant 0 : index
    %c0_22 = arith.constant 0 : index
    %41 = vector.load %arg4[%c2, %c0_21, %c0_22] : memref<4x128x128xbf16, #tpu.memory_space<vmem>>, vector<1x128x128xbf16>
    %42 = vector.shape_cast %41 : vector<1x128x128xbf16> to vector<128x128xbf16>
    %cst_23 = arith.constant dense<0.000000e+00> : vector<2x128xf32>
    %43 = tpu.matmul %40, %42, %cst_23 {dimension_numbers = #tpu.dot_dimension_numbers<[1], [0], [0], [1], [0, 0, 1, 1], [], []>} : vector<2x128xbf16>, vector<128x128xbf16>, vector<2x128xf32> -> vector<2x128xf32>
    %44 = arith.addf %38, %43 : vector<2x128xf32>
    %45 = vector.extract_strided_slice %25 {offsets = [6, 0], sizes = [2, 128], strides = [1, 1]} : vector<8x128xf32> to vector<2x128xf32>
    %46 = arith.truncf %45 : vector<2x128xf32> to vector<2x128xbf16>
    %c3 = arith.constant 3 : index
    %c0_24 = arith.constant 0 : index
    %c0_25 = arith.constant 0 : index
    %47 = vector.load %arg4[%c3, %c0_24, %c0_25] : memref<4x128x128xbf16, #tpu.memory_space<vmem>>, vector<1x128x128xbf16>
    %48 = vector.shape_cast %47 : vector<1x128x128xbf16> to vector<128x128xbf16>
    %cst_26 = arith.constant dense<0.000000e+00> : vector<2x128xf32>
    %49 = tpu.matmul %46, %48, %cst_26 {dimension_numbers = #tpu.dot_dimension_numbers<[1], [0], [0], [1], [0, 0, 1, 1], [], []>} : vector<2x128xbf16>, vector<128x128xbf16>, vector<2x128xf32> -> vector<2x128xf32>
    %50 = arith.addf %44, %49 : vector<2x128xf32>
    %c0_27 = arith.constant 0 : index
    %c0_28 = arith.constant 0 : index
    %51 = vector.load %arg5[%c0_27, %c0_28] : memref<1x128xf32, #tpu.memory_space<vmem>>, vector<1x128xf32>
    %52 = vector.broadcast %51 : vector<1x128xf32> to vector<2x128xf32>
    %53 = arith.addf %50, %52 : vector<2x128xf32>
    %c0_29 = arith.constant 0 : index
    %c0_30 = arith.constant 0 : index
    %54 = vector.load %arg6[%c0_29, %c0_30] : memref<2x128xf32, #tpu.memory_space<vmem>>, vector<2x128xf32>
    tpu.vector_store %arg6[%c0_29, %c0_30], %53 {strides = array<i32>} : memref<2x128xf32, #tpu.memory_space<vmem>>, vector<2x128xf32>,
    return
  }
}

</mosaic_0001>

<llo_original>
// kernel: dqn_forward.3
$region0: #{dqn_forward.3}
  #allocation0 [shape = 'u32[]', space=smem, size = 0x4, offset = 0x4, fixed_abs, tag = 'smem constant byte address 0x4 - core index']
  #allocation1 [shape = 'u32[72,128]{1,0:T(1,128)}', space=vmem, size = 0x9000, scoped, tag = 'internal scratch']
  %s0 = inlined_call_operand.vmem [shape: bf16[648,128], index: 0, kind: input, shape index: {}]
  %s1 = inlined_call_operand.vmem [shape: bf16[128,128], index: 1, kind: input, shape index: {}]
  %s2 = inlined_call_operand.vmem [shape: f32[1,128], index: 2, kind: input, shape index: {}]
  %s3 = inlined_call_operand.vmem [shape: f32[1,128], index: 3, kind: input, shape index: {}]
  %s4 = inlined_call_operand.vmem [shape: bf16[648,16], index: 4, kind: output, shape index: {}]
  %s5 = sld [smem:[#allocation0]]
  $region26: #{dqn_forward.3} parent=0
    _
  %s7 = ssub.s32 1, %s5
  %s8 = scalar_select 0, %s7, %s5
  // Predicated region
  $region2: #{dqn_forward.3} parent=0 // pred_check
    _
  $region3: #{dqn_forward.3} parent=0 // pred_check_branch
    %10 = sbr.rel (0) target = $region5
  $region4: #{dqn_forward.3} parent=0 // pred_region
    _
  $region5: #{dqn_forward.3} parent=0 // pred_fallthru
    _
  // Predicated region
  $region6: #{dqn_forward.3} parent=0 // pred_check
    _
  $region7: #{dqn_forward.3} parent=0 // pred_check_branch
    %12 = sbr.rel (0) target = $region9
  $region8: #{dqn_forward.3} parent=0 // pred_region
    _
  $region9: #{dqn_forward.3} parent=0 // pred_fallthru
    _
  // Predicated region
  $region10: #{dqn_forward.3} parent=0 // pred_check
    _
  $region11: #{dqn_forward.3} parent=0 // pred_check_branch
    %14 = sbr.rel (0) target = $region13
  $region12: #{dqn_forward.3} parent=0 // pred_region
    _
  $region13: #{dqn_forward.3} parent=0 // pred_fallthru
    _
  // Predicated region
  $region14: #{dqn_forward.3} parent=0 // pred_check
    _
  $region15: #{dqn_forward.3} parent=0 // pred_check_branch
    %16 = sbr.rel (0) target = $region17
  $region16: #{dqn_forward.3} parent=0 // pred_region
    _
  $region17: #{dqn_forward.3} parent=0 // pred_fallthru
    _
  %v17 = vld [vmem:[%s0] sm:$0xf]
  %v18 = vld [vmem:[%s0 + $0x4] sm:$0xf]
  %v19 = vld [vmem:[%s0 + $0x8] sm:$0xf]
  %v20 = vld [vmem:[%s0 + $0xc] sm:$0xf]
  %v21 = vld [vmem:[%s0 + $0x10] sm:$0xf]
  %v22 = vld [vmem:[%s0 + $0x14] sm:$0xf]
  %v23 = vld [vmem:[%s0 + $0x18] sm:$0xf]
  %v24 = vld [vmem:[%s0 + $0x1c] sm:$0xf]
  %v25 = vld [vmem:[%s0 + $0x20] sm:$0xf]
  %v26 = vld [vmem:[%s0 + $0x24] sm:$0xf]
  %v27 = vld [vmem:[%s0 + $0x28] sm:$0xf]
  %v28 = vld [vmem:[%s0 + $0x2c] sm:$0xf]
  %v29 = vld [vmem:[%s0 + $0x30] sm:$0xf]
  %v30 = vld [vmem:[%s0 + $0x34] sm:$0xf]
  %v31 = vld [vmem:[%s0 + $0x38] sm:$0xf]
  %v32 = vld [vmem:[%s0 + $0x3c] sm:$0xf]
  %v33 = vld [vmem:[%s0 + $0x40] sm:$0xf]
  %v34 = vld [vmem:[%s0 + $0x44] sm:$0xf]
  %v35 = vld [vmem:[%s0 + $0x48] sm:$0xf]
  %v36 = vld [vmem:[%s0 + $0x4c] sm:$0xf]
  %v37 = vld [vmem:[%s0 + $0x50] sm:$0xf]
  %v38 = vld [vmem:[%s0 + $0x54] sm:$0xf]
  %v39 = vld [vmem:[%s0 + $0x58] sm:$0xf]
  %v40 = vld [vmem:[%s0 + $0x5c] sm:$0xf]
  %v41 = vld [vmem:[%s0 + $0x60] sm:$0xf]
  %v42 = vld [vmem:[%s0 + $0x64] sm:$0xf]
  %v43 = vld [vmem:[%s0 + $0x68] sm:$0xf]
  %v44 = vld [vmem:[%s0 + $0x6c] sm:$0xf]
  %v45 = vld [vmem:[%s0 + $0x70] sm:$0xf]
  %v46 = vld [vmem:[%s0 + $0x74] sm:$0xf]
  %v47 = vld [vmem:[%s0 + $0x78] sm:$0xf]
  %v48 = vld [vmem:[%s0 + $0x7c] sm:$0xf]
  %v49 = vld [vmem:[%s0 + $0x80] sm:$0xf]
  %v50 = vld [vmem:[%s0 + $0x84] sm:$0xf]
  %v51 = vld [vmem:[%s0 + $0x88] sm:$0xf]
  %v52 = vld [vmem:[%s0 + $0x8c] sm:$0xf]
  %v53 = vld [vmem:[%s0 + $0x90] sm:$0xf]
  %v54 = vld [vmem:[%s0 + $0x94] sm:$0xf]
  %v55 = vld [vmem:[%s0 + $0x98] sm:$0xf]
  %v56 = vld [vmem:[%s0 + $0x9c] sm:$0xf]
  %v57 = vld [vmem:[%s0 + $0xa0] sm:$0xf]
  %v58 = vld [vmem:[%s0 + $0xa4] sm:$0xf]
  %v59 = vld [vmem:[%s0 + $0xa8] sm:$0xf]
  %v60 = vld [vmem:[%s0 + $0xac] sm:$0xf]
  %v61 = vld [vmem:[%s0 + $0xb0] sm:$0xf]
  %v62 = vld [vmem:[%s0 + $0xb4] sm:$0xf]
  %v63 = vld [vmem:[%s0 + $0xb8] sm:$0xf]
  %v64 = vld [vmem:[%s0 + $0xbc] sm:$0xf]
  %v65 = vld [vmem:[%s0 + $0xc0] sm:$0xf]
  %v66 = vld [vmem:[%s0 + $0xc4] sm:$0xf]
  %v67 = vld [vmem:[%s0 + $0xc8] sm:$0xf]
  %v68 = vld [vmem:[%s0 + $0xcc] sm:$0xf]
  %v69 = vld [vmem:[%s0 + $0xd0] sm:$0xf]
  %v70 = vld [vmem:[%s0 + $0xd4] sm:$0xf]
  %v71 = vld [vmem:[%s0 + $0xd8] sm:$0xf]
  %v72 = vld [vmem:[%s0 + $0xdc] sm:$0xf]
  %v73 = vld [vmem:[%s0 + $0xe0] sm:$0xf]
  %v74 = vld [vmem:[%s0 + $0xe4] sm:$0xf]
  %v75 = vld [vmem:[%s0 + $0xe8] sm:$0xf]
  %v76 = vld [vmem:[%s0 + $0xec] sm:$0xf]
  %v77 = vld [vmem:[%s0 + $0xf0] sm:$0xf]
  %v78 = vld [vmem:[%s0 + $0xf4] sm:$0xf]
  %v79 = vld [vmem:[%s0 + $0xf8] sm:$0xf]
  %v80 = vld [vmem:[%s0 + $0xfc] sm:$0xf]
  %v81 = vld [vmem:[%s0 + $0x100] sm:$0xf]
  %v82 = vld [vmem:[%s0 + $0x104] sm:$0xf]
  %v83 = vld [vmem:[%s0 + $0x108] sm:$0xf]
  %v84 = vld [vmem:[%s0 + $0x10c] sm:$0xf]
  %v85 = vld [vmem:[%s0 + $0x110] sm:$0xf]
  %v86 = vld [vmem:[%s0 + $0x114] sm:$0xf]
  %v87 = vld [vmem:[%s0 + $0x118] sm:$0xf]
  %v88 = vld [vmem:[%s0 + $0x11c] sm:$0xf]
  %v89 = vld [vmem:[%s0 + $0x120] sm:$0xf]
  %v90 = vld [vmem:[%s0 + $0x124] sm:$0xf]
  %v91 = vld [vmem:[%s0 + $0x128] sm:$0xf]
  %v92 = vld [vmem:[%s0 + $0x12c] sm:$0xf]
  %v93 = vld [vmem:[%s0 + $0x130] sm:$0xf]
  %v94 = vld [vmem:[%s0 + $0x134] sm:$0xf]
  %v95 = vld [vmem:[%s0 + $0x138] sm:$0xf]
  %v96 = vld [vmem:[%s0 + $0x13c] sm:$0xf]
  %v97 = vld [vmem:[%s0 + $0x140] sm:$0xf]
  %v98 = vld [vmem:[%s1] sm:$0xf]
  %v99 = vld [vmem:[%s1 + $0x4] sm:$0xf]
  %v100 = vld [vmem:[%s1 + $0x8] sm:$0xf]
  %v101 = vld [vmem:[%s1 + $0xc] sm:$0xf]
  %v102 = vld [vmem:[%s1 + $0x10] sm:$0xf]
  %v103 = vld [vmem:[%s1 + $0x14] sm:$0xf]
  %v104 = vld [vmem:[%s1 + $0x18] sm:$0xf]
  %v105 = vld [vmem:[%s1 + $0x1c] sm:$0xf]
  %v106 = vld [vmem:[%s1 + $0x20] sm:$0xf]
  %v107 = vld [vmem:[%s1 + $0x24] sm:$0xf]
  %v108 = vld [vmem:[%s1 + $0x28] sm:$0xf]
  %v109 = vld [vmem:[%s1 + $0x2c] sm:$0xf]
  %v110 = vld [vmem:[%s1 + $0x30] sm:$0xf]
  %v111 = vld [vmem:[%s1 + $0x34] sm:$0xf]
  %v112 = vld [vmem:[%s1 + $0x38] sm:$0xf]
  %v113 = vld [vmem:[%s1 + $0x3c] sm:$0xf]
  %v195 = vunpack.c.l.b16 %v17
  %v196 = vunpack.c.l.b16 %v18
  %v197 = vunpack.c.l.b16 %v19
  %v198 = vunpack.c.l.b16 %v20
  %v199 = vunpack.c.l.b16 %v21
  %v200 = vunpack.c.l.b16 %v22
  %v201 = vunpack.c.l.b16 %v23
  %v202 = vunpack.c.l.b16 %v24
  %v203 = vunpack.c.l.b16 %v25
  %v204 = vunpack.c.l.b16 %v26
  %v205 = vunpack.c.l.b16 %v27
  %v206 = vunpack.c.l.b16 %v28
  %v207 = vunpack.c.l.b16 %v29
  %v208 = vunpack.c.l.b16 %v30
  %v209 = vunpack.c.l.b16 %v31
  %v210 = vunpack.c.l.b16 %v32
  %v211 = vunpack.c.l.b16 %v33
  %v212 = vunpack.c.l.b16 %v34
  %v213 = vunpack.c.l.b16 %v35
  %v214 = vunpack.c.l.b16 %v36
  %v215 = vunpack.c.l.b16 %v37
  %v216 = vunpack.c.l.b16 %v38
  %v217 = vunpack.c.l.b16 %v39
  %v218 = vunpack.c.l.b16 %v40
  %v219 = vunpack.c.l.b16 %v41
  %v220 = vunpack.c.l.b16 %v42
  %v221 = vunpack.c.l.b16 %v43
  %v222 = vunpack.c.l.b16 %v44
  %v223 = vunpack.c.l.b16 %v45
  %v224 = vunpack.c.l.b16 %v46
  %v225 = vunpack.c.l.b16 %v47
  %v226 = vunpack.c.l.b16 %v48
  %v227 = vunpack.c.l.b16 %v49
  %v228 = vunpack.c.l.b16 %v50
  %v229 = vunpack.c.l.b16 %v51
  %v230 = vunpack.c.l.b16 %v52
  %v231 = vunpack.c.l.b16 %v53
  %v232 = vunpack.c.l.b16 %v54
  %v233 = vunpack.c.l.b16 %v55
  %v234 = vunpack.c.l.b16 %v56
  %v235 = vunpack.c.l.b16 %v57
  %v236 = vunpack.c.l.b16 %v58
  %v237 = vunpack.c.l.b16 %v59
  %v238 = vunpack.c.l.b16 %v60
  %v239 = vunpack.c.l.b16 %v61
  %v240 = vunpack.c.l.b16 %v62
  %v241 = vunpack.c.l.b16 %v63
  %v242 = vunpack.c.l.b16 %v64
  %v243 = vunpack.c.l.b16 %v65
  %v244 = vunpack.c.l.b16 %v66
  %v245 = vunpack.c.l.b16 %v67
  %v246 = vunpack.c.l.b16 %v68
  %v247 = vunpack.c.l.b16 %v69
  %v248 = vunpack.c.l.b16 %v70
  %v249 = vunpack.c.l.b16 %v71
  %v250 = vunpack.c.l.b16 %v72
  %v251 = vunpack.c.l.b16 %v73
  %v252 = vunpack.c.l.b16 %v74
  %v253 = vunpack.c.l.b16 %v75
  %v254 = vunpack.c.l.b16 %v76
  %v255 = vunpack.c.l.b16 %v77
  %v256 = vunpack.c.l.b16 %v78
  %v257 = vunpack.c.l.b16 %v79
  %v258 = vunpack.c.l.b16 %v80
  %v259 = vunpack.c.l.b16 %v81
  %v260 = vunpack.c.l.b16 %v82
  %v261 = vunpack.c.l.b16 %v83
  %v262 = vunpack.c.l.b16 %v84
  %v263 = vunpack.c.l.b16 %v85
  %v264 = vunpack.c.l.b16 %v86
  %v265 = vunpack.c.l.b16 %v87
  %v266 = vunpack.c.l.b16 %v88
  %v267 = vunpack.c.l.b16 %v89
  %v268 = vunpack.c.l.b16 %v90
  %v269 = vunpack.c.l.b16 %v91
  %v270 = vunpack.c.l.b16 %v92
  %v271 = vunpack.c.l.b16 %v93
  %v272 = vunpack.c.l.b16 %v94
  %v273 = vunpack.c.l.b16 %v95
  %v274 = vunpack.c.l.b16 %v96
  %v275 = vunpack.c.l.b16 %v97
  %v276 = vpack.c.b16 %v196, %v195
  %v277 = vpack.c.b16 %v198, %v197
  %v278 = vpack.c.b16 %v200, %v199
  %v279 = vpack.c.b16 %v202, %v201
  %v280 = vpack.c.b16 %v204, %v203
  %v281 = vpack.c.b16 %v206, %v205
  %v282 = vpack.c.b16 %v208, %v207
  %v283 = vpack.c.b16 %v210, %v209
  %v284 = vpack.c.b16 %v212, %v211
  %v285 = vpack.c.b16 %v214, %v213
  %v286 = vpack.c.b16 %v216, %v215
  %v287 = vpack.c.b16 %v218, %v217
  %v288 = vpack.c.b16 %v220, %v219
  %v289 = vpack.c.b16 %v222, %v221
  %v290 = vpack.c.b16 %v224, %v223
  %v291 = vpack.c.b16 %v226, %v225
  %v292 = vpack.c.b16 %v228, %v227
  %v293 = vpack.c.b16 %v230, %v229
  %v294 = vpack.c.b16 %v232, %v231
  %v295 = vpack.c.b16 %v234, %v233
  %v296 = vpack.c.b16 %v236, %v235
  %v297 = vpack.c.b16 %v238, %v237
  %v298 = vpack.c.b16 %v240, %v239
  %v299 = vpack.c.b16 %v242, %v241
  %v300 = vpack.c.b16 %v244, %v243
  %v301 = vpack.c.b16 %v246, %v245
  %v302 = vpack.c.b16 %v248, %v247
  %v303 = vpack.c.b16 %v250, %v249
  %v304 = vpack.c.b16 %v252, %v251
  %v305 = vpack.c.b16 %v254, %v253
  %v306 = vpack.c.b16 %v256, %v255
  %v307 = vpack.c.b16 %v258, %v257
  %v308 = vpack.c.b16 %v260, %v259
  %v309 = vpack.c.b16 %v262, %v261
  %v310 = vpack.c.b16 %v264, %v263
  %v311 = vpack.c.b16 %v266, %v265
  %v312 = vpack.c.b16 %v268, %v267
  %v313 = vpack.c.b16 %v270, %v269
  %v314 = vpack.c.b16 %v272, %v271
  %v315 = vpack.c.b16 %v274, %v273
  %v316 = vpack.c.b16 %v275, %v275
  %v374 = vunpack.c.l.b16 %v98
  %v375 = vunpack.c.l.b16 %v99
  %v376 = vunpack.c.l.b16 %v100
  %v377 = vunpack.c.l.b16 %v101
  %v378 = vunpack.c.l.b16 %v102
  %v379 = vunpack.c.l.b16 %v103
  %v380 = vunpack.c.l.b16 %v104
  %v381 = vunpack.c.l.b16 %v105
  %v382 = vunpack.c.l.b16 %v106
  %v383 = vunpack.c.l.b16 %v107
  %v384 = vunpack.c.l.b16 %v108
  %v385 = vunpack.c.l.b16 %v109
  %v386 = vunpack.c.l.b16 %v110
  %v387 = vunpack.c.l.b16 %v111
  %v388 = vunpack.c.l.b16 %v112
  %v389 = vunpack.c.l.b16 %v113
  %v390 = vpack.c.b16 %v375, %v374
  %v391 = vpack.c.b16 %v377, %v376
  %v392 = vpack.c.b16 %v379, %v378
  %v393 = vpack.c.b16 %v381, %v380
  %v394 = vpack.c.b16 %v383, %v382
  %v395 = vpack.c.b16 %v385, %v384
  %v396 = vpack.c.b16 %v387, %v386
  %v397 = vpack.c.b16 %v389, %v388
  %406 = vmatpush.bf16.msra.mxu0 %v397
  %407 = vmatpush.bf16.msra.mxu0 %v396
  %408 = vmatpush.bf16.msra.mxu0 %v395
  %409 = vmatpush.bf16.msra.mxu0 %v394
  %410 = vmatpush.bf16.msra.mxu0 %v393
  %411 = vmatpush.bf16.msra.mxu0 %v392
  %412 = vmatpush.bf16.msra.mxu0 %v391
  %413 = vmatpush.bf16.msra.mxu0 %v390
  %414 = vmatmul.bf16.gmra.mxu0 %v276
  %v415 = vpop.f32.mrf.mxu0
  %v416 = vadd.f32 0.0, %v415
  %v417 = vpop.f32.mrf.mxu0
  %v418 = vadd.f32 0.0, %v417
  %419 = vmatmul.bf16.gmra.mxu0 %v277
  %v420 = vpop.f32.mrf.mxu0
  %v421 = vadd.f32 0.0, %v420
  %v422 = vpop.f32.mrf.mxu0
  %v423 = vadd.f32 0.0, %v422
  %424 = vmatmul.bf16.gmra.mxu0 %v278
  %v425 = vpop.f32.mrf.mxu0
  %v426 = vadd.f32 0.0, %v425
  %v427 = vpop.f32.mrf.mxu0
  %v428 = vadd.f32 0.0, %v427
  %429 = vmatmul.bf16.gmra.mxu0 %v279
  %v430 = vpop.f32.mrf.mxu0
  %v431 = vadd.f32 0.0, %v430
  %v432 = vpop.f32.mrf.mxu0
  %v433 = vadd.f32 0.0, %v432
  %434 = vmatmul.bf16.gmra.mxu0 %v280
  %v435 = vpop.f32.mrf.mxu0
  %v436 = vadd.f32 0.0, %v435
  %v437 = vpop.f32.mrf.mxu0
  %v438 = vadd.f32 0.0, %v437
  %439 = vmatmul.bf16.gmra.mxu0 %v281
  %v440 = vpop.f32.mrf.mxu0
  %v441 = vadd.f32 0.0, %v440
  %v442 = vpop.f32.mrf.mxu0
  %v443 = vadd.f32 0.0, %v442
  %444 = vmatmul.bf16.gmra.mxu0 %v282
  %v445 = vpop.f32.mrf.mxu0
  %v446 = vadd.f32 0.0, %v445
  %v447 = vpop.f32.mrf.mxu0
  %v448 = vadd.f32 0.0, %v447
  %449 = vmatmul.bf16.gmra.mxu0 %v283
  %v450 = vpop.f32.mrf.mxu0
  %v451 = vadd.f32 0.0, %v450
  %v452 = vpop.f32.mrf.mxu0
  %v453 = vadd.f32 0.0, %v452
  %454 = vmatmul.bf16.gmra.mxu0 %v284
  %v455 = vpop.f32.mrf.mxu0
  %v456 = vadd.f32 0.0, %v455
  %v457 = vpop.f32.mrf.mxu0
  %v458 = vadd.f32 0.0, %v457
  %459 = vmatmul.bf16.gmra.mxu0 %v285
  %v460 = vpop.f32.mrf.mxu0
  %v461 = vadd.f32 0.0, %v460
  %v462 = vpop.f32.mrf.mxu0
  %v463 = vadd.f32 0.0, %v462
  %464 = vmatmul.bf16.gmra.mxu0 %v286
  %v465 = vpop.f32.mrf.mxu0
  %v466 = vadd.f32 0.0, %v465
  %v467 = vpop.f32.mrf.mxu0
  %v468 = vadd.f32 0.0, %v467
  %469 = vmatmul.bf16.gmra.mxu0 %v287
  %v470 = vpop.f32.mrf.mxu0
  %v471 = vadd.f32 0.0, %v470
  %v472 = vpop.f32.mrf.mxu0
  %v473 = vadd.f32 0.0, %v472
  %474 = vmatmul.bf16.gmra.mxu0 %v288
  %v475 = vpop.f32.mrf.mxu0
  %v476 = vadd.f32 0.0, %v475
  %v477 = vpop.f32.mrf.mxu0
  %v478 = vadd.f32 0.0, %v477
  %479 = vmatmul.bf16.gmra.mxu0 %v289
  %v480 = vpop.f32.mrf.mxu0
  %v481 = vadd.f32 0.0, %v480
  %v482 = vpop.f32.mrf.mxu0
  %v483 = vadd.f32 0.0, %v482
  %484 = vmatmul.bf16.gmra.mxu0 %v290
  %v485 = vpop.f32.mrf.mxu0
  %v486 = vadd.f32 0.0, %v485
  %v487 = vpop.f32.mrf.mxu0
  %v488 = vadd.f32 0.0, %v487
  %489 = vmatmul.bf16.gmra.mxu0 %v291
  %v490 = vpop.f32.mrf.mxu0
  %v491 = vadd.f32 0.0, %v490
  %v492 = vpop.f32.mrf.mxu0
  %v493 = vadd.f32 0.0, %v492
  %494 = vmatmul.bf16.gmra.mxu0 %v292
  %v495 = vpop.f32.mrf.mxu0
  %v496 = vadd.f32 0.0, %v495
  %v497 = vpop.f32.mrf.mxu0
  %v498 = vadd.f32 0.0, %v497
  %499 = vmatmul.bf16.gmra.mxu0 %v293
  %v500 = vpop.f32.mrf.mxu0
  %v501 = vadd.f32 0.0, %v500
  %v502 = vpop.f32.mrf.mxu0
  %v503 = vadd.f32 0.0, %v502
  %504 = vmatmul.bf16.gmra.mxu0 %v294
  %v505 = vpop.f32.mrf.mxu0
  %v506 = vadd.f32 0.0, %v505
  %v507 = vpop.f32.mrf.mxu0
  %v508 = vadd.f32 0.0, %v507
  %509 = vmatmul.bf16.gmra.mxu0 %v295
  %v510 = vpop.f32.mrf.mxu0
  %v511 = vadd.f32 0.0, %v510
  %v512 = vpop.f32.mrf.mxu0
  %v513 = vadd.f32 0.0, %v512
  %514 = vmatmul.bf16.gmra.mxu0 %v296
  %v515 = vpop.f32.mrf.mxu0
  %v516 = vadd.f32 0.0, %v515
  %v517 = vpop.f32.mrf.mxu0
  %v518 = vadd.f32 0.0, %v517
  %519 = vmatmul.bf16.gmra.mxu0 %v297
  %v520 = vpop.f32.mrf.mxu0
  %v521 = vadd.f32 0.0, %v520
  %v522 = vpop.f32.mrf.mxu0
  %v523 = vadd.f32 0.0, %v522
  %524 = vmatmul.bf16.gmra.mxu0 %v298
  %v525 = vpop.f32.mrf.mxu0
  %v526 = vadd.f32 0.0, %v525
  %v527 = vpop.f32.mrf.mxu0
  %v528 = vadd.f32 0.0, %v527
  %529 = vmatmul.bf16.gmra.mxu0 %v299
  %v530 = vpop.f32.mrf.mxu0
  %v531 = vadd.f32 0.0, %v530
  %v532 = vpop.f32.mrf.mxu0
  %v533 = vadd.f32 0.0, %v532
  %534 = vmatmul.bf16.gmra.mxu0 %v300
  %v535 = vpop.f32.mrf.mxu0
  %v536 = vadd.f32 0.0, %v535
  %v537 = vpop.f32.mrf.mxu0
  %v538 = vadd.f32 0.0, %v537
  %539 = vmatmul.bf16.gmra.mxu0 %v301
  %v540 = vpop.f32.mrf.mxu0
  %v541 = vadd.f32 0.0, %v540
  %v542 = vpop.f32.mrf.mxu0
  %v543 = vadd.f32 0.0, %v542
  %544 = vmatmul.bf16.gmra.mxu0 %v302
  %v545 = vpop.f32.mrf.mxu0
  %v546 = vadd.f32 0.0, %v545
  %v547 = vpop.f32.mrf.mxu0
  %v548 = vadd.f32 0.0, %v547
  %549 = vmatmul.bf16.gmra.mxu0 %v303
  %v550 = vpop.f32.mrf.mxu0
  %v551 = vadd.f32 0.0, %v550
  %v552 = vpop.f32.mrf.mxu0
  %v553 = vadd.f32 0.0, %v552
  %554 = vmatmul.bf16.gmra.mxu0 %v304
  %v555 = vpop.f32.mrf.mxu0
  %v556 = vadd.f32 0.0, %v555
  %v557 = vpop.f32.mrf.mxu0
  %v558 = vadd.f32 0.0, %v557
  %559 = vmatmul.bf16.gmra.mxu0 %v305
  %v560 = vpop.f32.mrf.mxu0
  %v561 = vadd.f32 0.0, %v560
  %v562 = vpop.f32.mrf.mxu0
  %v563 = vadd.f32 0.0, %v562
  %564 = vmatmul.bf16.gmra.mxu0 %v306
  %v565 = vpop.f32.mrf.mxu0
  %v566 = vadd.f32 0.0, %v565
  %v567 = vpop.f32.mrf.mxu0
  %v568 = vadd.f32 0.0, %v567
  %569 = vmatmul.bf16.gmra.mxu0 %v307
  %v570 = vpop.f32.mrf.mxu0
  %v571 = vadd.f32 0.0, %v570
  %v572 = vpop.f32.mrf.mxu0
  %v573 = vadd.f32 0.0, %v572
  %574 = vmatmul.bf16.gmra.mxu0 %v308
  %v575 = vpop.f32.mrf.mxu0
  %v576 = vadd.f32 0.0, %v575
  %v577 = vpop.f32.mrf.mxu0
  %v578 = vadd.f32 0.0, %v577
  %579 = vmatmul.bf16.gmra.mxu0 %v309
  %v580 = vpop.f32.mrf.mxu0
  %v581 = vadd.f32 0.0, %v580
  %v582 = vpop.f32.mrf.mxu0
  %v583 = vadd.f32 0.0, %v582
  %584 = vmatmul.bf16.gmra.mxu0 %v310
  %v585 = vpop.f32.mrf.mxu0
  %v586 = vadd.f32 0.0, %v585
  %v587 = vpop.f32.mrf.mxu0
  %v588 = vadd.f32 0.0, %v587
  %589 = vmatmul.bf16.gmra.mxu0 %v311
  %v590 = vpop.f32.mrf.mxu0
  %v591 = vadd.f32 0.0, %v590
  %v592 = vpop.f32.mrf.mxu0
  %v593 = vadd.f32 0.0, %v592
  %594 = vmatmul.bf16.gmra.mxu0 %v312
  %v595 = vpop.f32.mrf.mxu0
  %v596 = vadd.f32 0.0, %v595
  %v597 = vpop.f32.mrf.mxu0
  %v598 = vadd.f32 0.0, %v597
  %599 = vmatmul.bf16.gmra.mxu0 %v313
  %v600 = vpop.f32.mrf.mxu0
  %v601 = vadd.f32 0.0, %v600
  %v602 = vpop.f32.mrf.mxu0
  %v603 = vadd.f32 0.0, %v602
  %604 = vmatmul.bf16.gmra.mxu0 %v314
  %v605 = vpop.f32.mrf.mxu0
  %v606 = vadd.f32 0.0, %v605
  %v607 = vpop.f32.mrf.mxu0
  %v608 = vadd.f32 0.0, %v607
  %609 = vmatmul.bf16.gmra.mxu0 %v315
  %v610 = vpop.f32.mrf.mxu0
  %v611 = vadd.f32 0.0, %v610
  %v612 = vpop.f32.mrf.mxu0
  %v613 = vadd.f32 0.0, %v612
  %614 = vmatmul.bf16.gmra.mxu0 %v316
  %v615 = vpop.f32.mrf.mxu0
  %v616 = vadd.f32 0.0, %v615
  %v617 = vpop.f32.mrf.mxu0
  %618 = vdwg.mxu0
  %v619 = vadd.f32 %v416, %v418
  %v620 = vadd.f32 %v619, %v421
  %v621 = vadd.f32 %v620, %v423
  %v622 = vadd.f32 %v621, %v426
  %v623 = vadd.f32 %v622, %v428
  %v624 = vadd.f32 %v623, %v431
  %v625 = vadd.f32 %v624, %v433
  %v626 = vadd.f32 %v625, %v436
  %v627 = vadd.f32 %v626, %v438
  %v628 = vadd.f32 %v627, %v441
  %v629 = vadd.f32 %v628, %v443
  %v630 = vadd.f32 %v629, %v446
  %v631 = vadd.f32 %v630, %v448
  %v632 = vadd.f32 %v631, %v451
  %v633 = vadd.f32 %v632, %v453
  %v634 = vadd.f32 %v633, %v456
  %v635 = vadd.f32 %v634, %v458
  %v636 = vadd.f32 %v635, %v461
  %v637 = vadd.f32 %v636, %v463
  %v638 = vadd.f32 %v637, %v466
  %v639 = vadd.f32 %v638, %v468
  %v640 = vadd.f32 %v639, %v471
  %v641 = vadd.f32 %v640, %v473
  %v642 = vadd.f32 %v641, %v476
  %v643 = vadd.f32 %v642, %v478
  %v644 = vadd.f32 %v643, %v481
  %v645 = vadd.f32 %v644, %v483
  %v646 = vadd.f32 %v645, %v486
  %v647 = vadd.f32 %v646, %v488
  %v648 = vadd.f32 %v647, %v491
  %v649 = vadd.f32 %v648, %v493
  %v650 = vadd.f32 %v649, %v496
  %v651 = vadd.f32 %v650, %v498
  %v652 = vadd.f32 %v651, %v501
  %v653 = vadd.f32 %v652, %v503
  %v654 = vadd.f32 %v653, %v506
  %v655 = vadd.f32 %v654, %v508
  %v656 = vadd.f32 %v655, %v511
  %v657 = vadd.f32 %v656, %v513
  %v658 = vadd.f32 %v657, %v516
  %v659 = vadd.f32 %v658, %v518
  %v660 = vadd.f32 %v659, %v521
  %v661 = vadd.f32 %v660, %v523
  %v662 = vadd.f32 %v661, %v526
  %v663 = vadd.f32 %v662, %v528
  %v664 = vadd.f32 %v663, %v531
  %v665 = vadd.f32 %v664, %v533
  %v666 = vadd.f32 %v665, %v536
  %v667 = vadd.f32 %v666, %v538
  %v668 = vadd.f32 %v667, %v541
  %v669 = vadd.f32 %v668, %v543
  %v670 = vadd.f32 %v669, %v546
  %v671 = vadd.f32 %v670, %v548
  %v672 = vadd.f32 %v671, %v551
  %v673 = vadd.f32 %v672, %v553
  %v674 = vadd.f32 %v673, %v556
  %v675 = vadd.f32 %v674, %v558
  %v676 = vadd.f32 %v675, %v561
  %v677 = vadd.f32 %v676, %v563
  %v678 = vadd.f32 %v677, %v566
  %v679 = vadd.f32 %v678, %v568
  %v680 = vadd.f32 %v679, %v571
  %v681 = vadd.f32 %v680, %v573
  %v682 = vadd.f32 %v681, %v576
  %v683 = vadd.f32 %v682, %v578
  %v684 = vadd.f32 %v683, %v581
  %v685 = vadd.f32 %v684, %v583
  %v686 = vadd.f32 %v685, %v586
  %v687 = vadd.f32 %v686, %v588
  %v688 = vadd.f32 %v687, %v591
  %v689 = vadd.f32 %v688, %v593
  %v690 = vadd.f32 %v689, %v596
  %v691 = vadd.f32 %v690, %v598
  %v692 = vadd.f32 %v691, %v601
  %v693 = vadd.f32 %v692, %v603
  %v694 = vadd.f32 %v693, %v606
  %v695 = vadd.f32 %v694, %v608
  %v696 = vadd.f32 %v695, %v611
  %v697 = vadd.f32 %v696, %v613
  %v698 = vadd.f32 %v697, %v616
  %v699 = vrot.slane %v698, 4
  %v700 = vadd.f32 %v698, %v699
  %v701 = vrot.slane %v700, 2
  %v702 = vadd.f32 %v700, %v701
  %v703 = vrot.slane %v702, 1
  %v704 = vadd.f32 %v702, %v703
  %v705 = vmul.f32 %v704, 0.0015432099
  %v706 = vsub.f32 %v416, %v705
  %v707 = vsub.f32 %v418, %v705
  %v708 = vsub.f32 %v421, %v705
  %v709 = vsub.f32 %v423, %v705
  %v710 = vsub.f32 %v426, %v705
  %v711 = vsub.f32 %v428, %v705
  %v712 = vsub.f32 %v431, %v705
  %v713 = vsub.f32 %v433, %v705
  %v714 = vsub.f32 %v436, %v705
  %v715 = vsub.f32 %v438, %v705
  %v716 = vsub.f32 %v441, %v705
  %v717 = vsub.f32 %v443, %v705
  %v718 = vsub.f32 %v446, %v705
  %v719 = vsub.f32 %v448, %v705
  %v720 = vsub.f32 %v451, %v705
  %v721 = vsub.f32 %v453, %v705
  %v722 = vsub.f32 %v456, %v705
  %v723 = vsub.f32 %v458, %v705
  %v724 = vsub.f32 %v461, %v705
  %v725 = vsub.f32 %v463, %v705
  %v726 = vsub.f32 %v466, %v705
  %v727 = vsub.f32 %v468, %v705
  %v728 = vsub.f32 %v471, %v705
  %v729 = vsub.f32 %v473, %v705
  %v730 = vsub.f32 %v476, %v705
  %v731 = vsub.f32 %v478, %v705
  %v732 = vsub.f32 %v481, %v705
  %v733 = vsub.f32 %v483, %v705
  %v734 = vsub.f32 %v486, %v705
  %v735 = vsub.f32 %v488, %v705
  %v736 = vsub.f32 %v491, %v705
  %v737 = vsub.f32 %v493, %v705
  %v738 = vsub.f32 %v496, %v705
  %v739 = vsub.f32 %v498, %v705
  %v740 = vsub.f32 %v501, %v705
  %v741 = vsub.f32 %v503, %v705
  %v742 = vsub.f32 %v506, %v705
  %v743 = vsub.f32 %v508, %v705
  %v744 = vsub.f32 %v511, %v705
  %v745 = vsub.f32 %v513, %v705
  %v746 = vsub.f32 %v516, %v705
  %v747 = vsub.f32 %v518, %v705
  %v748 = vsub.f32 %v521, %v705
  %v749 = vsub.f32 %v523, %v705
  %v750 = vsub.f32 %v526, %v705
  %v751 = vsub.f32 %v528, %v705
  %v752 = vsub.f32 %v531, %v705
  %v753 = vsub.f32 %v533, %v705
  %v754 = vsub.f32 %v536, %v705
  %v755 = vsub.f32 %v538, %v705
  %v756 = vsub.f32 %v541, %v705
  %v757 = vsub.f32 %v543, %v705
  %v758 = vsub.f32 %v546, %v705
  %v759 = vsub.f32 %v548, %v705
  %v760 = vsub.f32 %v551, %v705
  %v761 = vsub.f32 %v553, %v705
  %v762 = vsub.f32 %v556, %v705
  %v763 = vsub.f32 %v558, %v705
  %v764 = vsub.f32 %v561, %v705
  %v765 = vsub.f32 %v563, %v705
  %v766 = vsub.f32 %v566, %v705
  %v767 = vsub.f32 %v568, %v705
  %v768 = vsub.f32 %v571, %v705
  %v769 = vsub.f32 %v573, %v705
  %v770 = vsub.f32 %v576, %v705
  %v771 = vsub.f32 %v578, %v705
  %v772 = vsub.f32 %v581, %v705
  %v773 = vsub.f32 %v583, %v705
  %v774 = vsub.f32 %v586, %v705
  %v775 = vsub.f32 %v588, %v705
  %v776 = vsub.f32 %v591, %v705
  %v777 = vsub.f32 %v593, %v705
  %v778 = vsub.f32 %v596, %v705
  %v779 = vsub.f32 %v598, %v705
  %v780 = vsub.f32 %v601, %v705
  %v781 = vsub.f32 %v603, %v705
  %v782 = vsub.f32 %v606, %v705
  %v783 = vsub.f32 %v608, %v705
  %v784 = vsub.f32 %v611, %v705
  %v785 = vsub.f32 %v613, %v705
  %v786 = vsub.f32 %v616, %v705
  %v787 = vmul.f32 %v706, %v706
  %v788 = vmul.f32 %v707, %v707
  %v789 = vmul.f32 %v708, %v708
  %v790 = vmul.f32 %v709, %v709
  %v791 = vmul.f32 %v710, %v710
  %v792 = vmul.f32 %v711, %v711
  %v793 = vmul.f32 %v712, %v712
  %v794 = vmul.f32 %v713, %v713
  %v795 = vmul.f32 %v714, %v714
  %v796 = vmul.f32 %v715, %v715
  %v797 = vmul.f32 %v716, %v716
  %v798 = vmul.f32 %v717, %v717
  %v799 = vmul.f32 %v718, %v718
  %v800 = vmul.f32 %v719, %v719
  %v801 = vmul.f32 %v720, %v720
  %v802 = vmul.f32 %v721, %v721
  %v803 = vmul.f32 %v722, %v722
  %v804 = vmul.f32 %v723, %v723
  %v805 = vmul.f32 %v724, %v724
  %v806 = vmul.f32 %v725, %v725
  %v807 = vmul.f32 %v726, %v726
  %v808 = vmul.f32 %v727, %v727
  %v809 = vmul.f32 %v728, %v728
  %v810 = vmul.f32 %v729, %v729
  %v811 = vmul.f32 %v730, %v730
  %v812 = vmul.f32 %v731, %v731
  %v813 = vmul.f32 %v732, %v732
  %v814 = vmul.f32 %v733, %v733
  %v815 = vmul.f32 %v734, %v734
  %v816 = vmul.f32 %v735, %v735
  %v817 = vmul.f32 %v736, %v736
  %v818 = vmul.f32 %v737, %v737
  %v819 = vmul.f32 %v738, %v738
  %v820 = vmul.f32 %v739, %v739
  %v821 = vmul.f32 %v740, %v740
  %v822 = vmul.f32 %v741, %v741
  %v823 = vmul.f32 %v742, %v742
  %v824 = vmul.f32 %v743, %v743
  %v825 = vmul.f32 %v744, %v744
  %v826 = vmul.f32 %v745, %v745
  %v827 = vmul.f32 %v746, %v746
  %v828 = vmul.f32 %v747, %v747
  %v829 = vmul.f32 %v748, %v748
  %v830 = vmul.f32 %v749, %v749
  %v831 = vmul.f32 %v750, %v750
  %v832 = vmul.f32 %v751, %v751
  %v833 = vmul.f32 %v752, %v752
  %v834 = vmul.f32 %v753, %v753
  %v835 = vmul.f32 %v754, %v754
  %v836 = vmul.f32 %v755, %v755
  %v837 = vmul.f32 %v756, %v756
  %v838 = vmul.f32 %v757, %v757
  %v839 = vmul.f32 %v758, %v758
  %v840 = vmul.f32 %v759, %v759
  %v841 = vmul.f32 %v760, %v760
  %v842 = vmul.f32 %v761, %v761
  %v843 = vmul.f32 %v762, %v762
  %v844 = vmul.f32 %v763, %v763
  %v845 = vmul.f32 %v764, %v764
  %v846 = vmul.f32 %v765, %v765
  %v847 = vmul.f32 %v766, %v766
  %v848 = vmul.f32 %v767, %v767
  %v849 = vmul.f32 %v768, %v768
  %v850 = vmul.f32 %v769, %v769
  %v851 = vmul.f32 %v770, %v770
  %v852 = vmul.f32 %v771, %v771
  %v853 = vmul.f32 %v772, %v772
  %v854 = vmul.f32 %v773, %v773
  %v855 = vmul.f32 %v774, %v774
  %v856 = vmul.f32 %v775, %v775
  %v857 = vmul.f32 %v776, %v776
  %v858 = vmul.f32 %v777, %v777
  %v859 = vmul.f32 %v778, %v778
  %v860 = vmul.f32 %v779, %v779
  %v861 = vmul.f32 %v780, %v780
  %v862 = vmul.f32 %v781, %v781
  %v863 = vmul.f32 %v782, %v782
  %v864 = vmul.f32 %v783, %v783
  %v865 = vmul.f32 %v784, %v784
  %v866 = vmul.f32 %v785, %v785
  %v867 = vmul.f32 %v786, %v786
  %v868 = vadd.f32 %v787, %v788
  %v869 = vadd.f32 %v868, %v789
  %v870 = vadd.f32 %v869, %v790
  %v871 = vadd.f32 %v870, %v791
  %v872 = vadd.f32 %v871, %v792
  %v873 = vadd.f32 %v872, %v793
  %v874 = vadd.f32 %v873, %v794
  %v875 = vadd.f32 %v874, %v795
  %v876 = vadd.f32 %v875, %v796
  %v877 = vadd.f32 %v876, %v797
  %v878 = vadd.f32 %v877, %v798
  %v879 = vadd.f32 %v878, %v799
  %v880 = vadd.f32 %v879, %v800
  %v881 = vadd.f32 %v880, %v801
  %v882 = vadd.f32 %v881, %v802
  %v883 = vadd.f32 %v882, %v803
  %v884 = vadd.f32 %v883, %v804
  %v885 = vadd.f32 %v884, %v805
  %v886 = vadd.f32 %v885, %v806
  %v887 = vadd.f32 %v886, %v807
  %v888 = vadd.f32 %v887, %v808
  %v889 = vadd.f32 %v888, %v809
  %v890 = vadd.f32 %v889, %v810
  %v891 = vadd.f32 %v890, %v811
  %v892 = vadd.f32 %v891, %v812
  %v893 = vadd.f32 %v892, %v813
  %v894 = vadd.f32 %v893, %v814
  %v895 = vadd.f32 %v894, %v815
  %v896 = vadd.f32 %v895, %v816
  %v897 = vadd.f32 %v896, %v817
  %v898 = vadd.f32 %v897, %v818
  %v899 = vadd.f32 %v898, %v819
  %v900 = vadd.f32 %v899, %v820
  %v901 = vadd.f32 %v900, %v821
  %v902 = vadd.f32 %v901, %v822
  %v903 = vadd.f32 %v902, %v823
  %v904 = vadd.f32 %v903, %v824
  %v905 = vadd.f32 %v904, %v825
  %v906 = vadd.f32 %v905, %v826
  %v907 = vadd.f32 %v906, %v827
  %v908 = vadd.f32 %v907, %v828
  %v909 = vadd.f32 %v908, %v829
  %v910 = vadd.f32 %v909, %v830
  %v911 = vadd.f32 %v910, %v831
  %v912 = vadd.f32 %v911, %v832
  %v913 = vadd.f32 %v912, %v833
  %v914 = vadd.f32 %v913, %v834
  %v915 = vadd.f32 %v914, %v835
  %v916 = vadd.f32 %v915, %v836
  %v917 = vadd.f32 %v916, %v837
  %v918 = vadd.f32 %v917, %v838
  %v919 = vadd.f32 %v918, %v839
  %v920 = vadd.f32 %v919, %v840
  %v921 = vadd.f32 %v920, %v841
  %v922 = vadd.f32 %v921, %v842
  %v923 = vadd.f32 %v922, %v843
  %v924 = vadd.f32 %v923, %v844
  %v925 = vadd.f32 %v924, %v845
  %v926 = vadd.f32 %v925, %v846
  %v927 = vadd.f32 %v926, %v847
  %v928 = vadd.f32 %v927, %v848
  %v929 = vadd.f32 %v928, %v849
  %v930 = vadd.f32 %v929, %v850
  %v931 = vadd.f32 %v930, %v851
  %v932 = vadd.f32 %v931, %v852
  %v933 = vadd.f32 %v932, %v853
  %v934 = vadd.f32 %v933, %v854
  %v935 = vadd.f32 %v934, %v855
  %v936 = vadd.f32 %v935, %v856
  %v937 = vadd.f32 %v936, %v857
  %v938 = vadd.f32 %v937, %v858
  %v939 = vadd.f32 %v938, %v859
  %v940 = vadd.f32 %v939, %v860
  %v941 = vadd.f32 %v940, %v861
  %v942 = vadd.f32 %v941, %v862
  %v943 = vadd.f32 %v942, %v863
  %v944 = vadd.f32 %v943, %v864
  %v945 = vadd.f32 %v944, %v865
  %v946 = vadd.f32 %v945, %v866
  %v947 = vadd.f32 %v946, %v867
  %v948 = vrot.slane %v947, 4
  %v949 = vadd.f32 %v947, %v948
  %v950 = vrot.slane %v949, 2
  %v951 = vadd.f32 %v949, %v950
  %v952 = vrot.slane %v951, 1
  %v953 = vadd.f32 %v951, %v952
  %v954 = vmul.f32 %v953, 0.0015432099
  %v955 = vadd.f32 %v954, 1e-05
  %v956 = vrsqrt.pop %v955
  %v957 = vmul.f32 %v956, %v955
  %v958 = vmul.f32 %v957, %v956
  %v959 = vmul.f32 0.5, %v958
  %v960 = vsub.f32 1.5, %v959
  %v961 = vmul.f32 %v956, %v960
  %vm962 = vweird.f32 %v955
  %vm963 = vweird.f32 %v956
  %vm964 = vmor %vm962, %vm963
  %v965 = vsel %vm964, %v956, %v961
  %v966 = vld [vmem:[%s2] sm:$0x1]
  %v967 = vmul.f32 %v965, %v966
  %v968 = vperm.slane %v967, 0
  %v969 = vmul.f32 %v706, %v968
  %v970 = vmul.f32 %v707, %v968
  %v971 = vmul.f32 %v708, %v968
  %v972 = vmul.f32 %v709, %v968
  %v973 = vmul.f32 %v710, %v968
  %v974 = vmul.f32 %v711, %v968
  %v975 = vmul.f32 %v712, %v968
  %v976 = vmul.f32 %v713, %v968
  %v977 = vmul.f32 %v714, %v968
  %v978 = vmul.f32 %v715, %v968
  %v979 = vmul.f32 %v716, %v968
  %v980 = vmul.f32 %v717, %v968
  %v981 = vmul.f32 %v718, %v968
  %v982 = vmul.f32 %v719, %v968
  %v983 = vmul.f32 %v720, %v968
  %v984 = vmul.f32 %v721, %v968
  %v985 = vmul.f32 %v722, %v968
  %v986 = vmul.f32 %v723, %v968
  %v987 = vmul.f32 %v724, %v968
  %v988 = vmul.f32 %v725, %v968
  %v989 = vmul.f32 %v726, %v968
  %v990 = vmul.f32 %v727, %v968
  %v991 = vmul.f32 %v728, %v968
  %v992 = vmul.f32 %v729, %v968
  %v993 = vmul.f32 %v730, %v968
  %v994 = vmul.f32 %v731, %v968
  %v995 = vmul.f32 %v732, %v968
  %v996 = vmul.f32 %v733, %v968
  %v997 = vmul.f32 %v734, %v968
  %v998 = vmul.f32 %v735, %v968
  %v999 = vmul.f32 %v736, %v968
  %v1000 = vmul.f32 %v737, %v968
  %v1001 = vmul.f32 %v738, %v968
  %v1002 = vmul.f32 %v739, %v968
  %v1003 = vmul.f32 %v740, %v968
  %v1004 = vmul.f32 %v741, %v968
  %v1005 = vmul.f32 %v742, %v968
  %v1006 = vmul.f32 %v743, %v968
  %v1007 = vmul.f32 %v744, %v968
  %v1008 = vmul.f32 %v745, %v968
  %v1009 = vmul.f32 %v746, %v968
  %v1010 = vmul.f32 %v747, %v968
  %v1011 = vmul.f32 %v748, %v968
  %v1012 = vmul.f32 %v749, %v968
  %v1013 = vmul.f32 %v750, %v968
  %v1014 = vmul.f32 %v751, %v968
  %v1015 = vmul.f32 %v752, %v968
  %v1016 = vmul.f32 %v753, %v968
  %v1017 = vmul.f32 %v754, %v968
  %v1018 = vmul.f32 %v755, %v968
  %v1019 = vmul.f32 %v756, %v968
  %v1020 = vmul.f32 %v757, %v968
  %v1021 = vmul.f32 %v758, %v968
  %v1022 = vmul.f32 %v759, %v968
  %v1023 = vmul.f32 %v760, %v968
  %v1024 = vmul.f32 %v761, %v968
  %v1025 = vmul.f32 %v762, %v968
  %v1026 = vmul.f32 %v763, %v968
  %v1027 = vmul.f32 %v764, %v968
  %v1028 = vmul.f32 %v765, %v968
  %v1029 = vmul.f32 %v766, %v968
  %v1030 = vmul.f32 %v767, %v968
  %v1031 = vmul.f32 %v768, %v968
  %v1032 = vmul.f32 %v769, %v968
  %v1033 = vmul.f32 %v770, %v968
  %v1034 = vmul.f32 %v771, %v968
  %v1035 = vmul.f32 %v772, %v968
  %v1036 = vmul.f32 %v773, %v968
  %v1037 = vmul.f32 %v774, %v968
  %v1038 = vmul.f32 %v775, %v968
  %v1039 = vmul.f32 %v776, %v968
  %v1040 = vmul.f32 %v777, %v968
  %v1041 = vmul.f32 %v778, %v968
  %v1042 = vmul.f32 %v779, %v968
  %v1043 = vmul.f32 %v780, %v968
  %v1044 = vmul.f32 %v781, %v968
  %v1045 = vmul.f32 %v782, %v968
  %v1046 = vmul.f32 %v783, %v968
  %v1047 = vmul.f32 %v784, %v968
  %v1048 = vmul.f32 %v785, %v968
  %v1049 = vmul.f32 %v786, %v968
  %v1050 = vld [vmem:[%s3] sm:$0x1]
  %v1052 = vperm.slane %v1050, 0
  %v1054 = vadd.f32 %v969, %v1052
  %v1055 = vadd.f32 %v970, %v1052
  %v1056 = vadd.f32 %v971, %v1052
  %v1057 = vadd.f32 %v972, %v1052
  %v1058 = vadd.f32 %v973, %v1052
  %v1059 = vadd.f32 %v974, %v1052
  %v1060 = vadd.f32 %v975, %v1052
  %v1061 = vadd.f32 %v976, %v1052
  %v1062 = vadd.f32 %v977, %v1052
  %v1063 = vadd.f32 %v978, %v1052
  %v1064 = vadd.f32 %v979, %v1052
  %v1065 = vadd.f32 %v980, %v1052
  %v1066 = vadd.f32 %v981, %v1052
  %v1067 = vadd.f32 %v982, %v1052
  %v1068 = vadd.f32 %v983, %v1052
  %v1069 = vadd.f32 %v984, %v1052
  %v1070 = vadd.f32 %v985, %v1052
  %v1071 = vadd.f32 %v986, %v1052
  %v1072 = vadd.f32 %v987, %v1052
  %v1073 = vadd.f32 %v988, %v1052
  %v1074 = vadd.f32 %v989, %v1052
  %v1075 = vadd.f32 %v990, %v1052
  %v1076 = vadd.f32 %v991, %v1052
  %v1077 = vadd.f32 %v992, %v1052
  %v1078 = vadd.f32 %v993, %v1052
  %v1079 = vadd.f32 %v994, %v1052
  %v1080 = vadd.f32 %v995, %v1052
  %v1081 = vadd.f32 %v996, %v1052
  %v1082 = vadd.f32 %v997, %v1052
  %v1083 = vadd.f32 %v998, %v1052
  %v1084 = vadd.f32 %v999, %v1052
  %v1085 = vadd.f32 %v1000, %v1052
  %v1086 = vadd.f32 %v1001, %v1052
  %v1087 = vadd.f32 %v1002, %v1052
  %v1088 = vadd.f32 %v1003, %v1052
  %v1089 = vadd.f32 %v1004, %v1052
  %v1090 = vadd.f32 %v1005, %v1052
  %v1091 = vadd.f32 %v1006, %v1052
  %v1092 = vadd.f32 %v1007, %v1052
  %v1093 = vadd.f32 %v1008, %v1052
  %v1094 = vadd.f32 %v1009, %v1052
  %v1095 = vadd.f32 %v1010, %v1052
  %v1096 = vadd.f32 %v1011, %v1052
  %v1097 = vadd.f32 %v1012, %v1052
  %v1098 = vadd.f32 %v1013, %v1052
  %v1099 = vadd.f32 %v1014, %v1052
  %v1100 = vadd.f32 %v1015, %v1052
  %v1101 = vadd.f32 %v1016, %v1052
  %v1102 = vadd.f32 %v1017, %v1052
  %v1103 = vadd.f32 %v1018, %v1052
  %v1104 = vadd.f32 %v1019, %v1052
  %v1105 = vadd.f32 %v1020, %v1052
  %v1106 = vadd.f32 %v1021, %v1052
  %v1107 = vadd.f32 %v1022, %v1052
  %v1108 = vadd.f32 %v1023, %v1052
  %v1109 = vadd.f32 %v1024, %v1052
  %v1110 = vadd.f32 %v1025, %v1052
  %v1111 = vadd.f32 %v1026, %v1052
  %v1112 = vadd.f32 %v1027, %v1052
  %v1113 = vadd.f32 %v1028, %v1052
  %v1114 = vadd.f32 %v1029, %v1052
  %v1115 = vadd.f32 %v1030, %v1052
  %v1116 = vadd.f32 %v1031, %v1052
  %v1117 = vadd.f32 %v1032, %v1052
  %v1118 = vadd.f32 %v1033, %v1052
  %v1119 = vadd.f32 %v1034, %v1052
  %v1120 = vadd.f32 %v1035, %v1052
  %v1121 = vadd.f32 %v1036, %v1052
  %v1122 = vadd.f32 %v1037, %v1052
  %v1123 = vadd.f32 %v1038, %v1052
  %v1124 = vadd.f32 %v1039, %v1052
  %v1125 = vadd.f32 %v1040, %v1052
  %v1126 = vadd.f32 %v1041, %v1052
  %v1127 = vadd.f32 %v1042, %v1052
  %v1128 = vadd.f32 %v1043, %v1052
  %v1129 = vadd.f32 %v1044, %v1052
  %v1130 = vadd.f32 %v1045, %v1052
  %v1131 = vadd.f32 %v1046, %v1052
  %v1132 = vadd.f32 %v1047, %v1052
  %v1133 = vadd.f32 %v1048, %v1052
  %v1134 = vadd.f32 %v1049, %v1052
  %v1135 = vmax.f32 %v1054, 0.0
  %v1136 = vmax.f32 %v1055, 0.0
  %v1137 = vmax.f32 %v1056, 0.0
  %v1138 = vmax.f32 %v1057, 0.0
  %v1139 = vmax.f32 %v1058, 0.0
  %v1140 = vmax.f32 %v1059, 0.0
  %v1141 = vmax.f32 %v1060, 0.0
  %v1142 = vmax.f32 %v1061, 0.0
  %v1143 = vmax.f32 %v1062, 0.0
  %v1144 = vmax.f32 %v1063, 0.0
  %v1145 = vmax.f32 %v1064, 0.0
  %v1146 = vmax.f32 %v1065, 0.0
  %v1147 = vmax.f32 %v1066, 0.0
  %v1148 = vmax.f32 %v1067, 0.0
  %v1149 = vmax.f32 %v1068, 0.0
  %v1150 = vmax.f32 %v1069, 0.0
  %v1151 = vmax.f32 %v1070, 0.0
  %v1152 = vmax.f32 %v1071, 0.0
  %v1153 = vmax.f32 %v1072, 0.0
  %v1154 = vmax.f32 %v1073, 0.0
  %v1155 = vmax.f32 %v1074, 0.0
  %v1156 = vmax.f32 %v1075, 0.0
  %v1157 = vmax.f32 %v1076, 0.0
  %v1158 = vmax.f32 %v1077, 0.0
  %v1159 = vmax.f32 %v1078, 0.0
  %v1160 = vmax.f32 %v1079, 0.0
  %v1161 = vmax.f32 %v1080, 0.0
  %v1162 = vmax.f32 %v1081, 0.0
  %v1163 = vmax.f32 %v1082, 0.0
  %v1164 = vmax.f32 %v1083, 0.0
  %v1165 = vmax.f32 %v1084, 0.0
  %v1166 = vmax.f32 %v1085, 0.0
  %v1167 = vmax.f32 %v1086, 0.0
  %v1168 = vmax.f32 %v1087, 0.0
  %v1169 = vmax.f32 %v1088, 0.0
  %v1170 = vmax.f32 %v1089, 0.0
  %v1171 = vmax.f32 %v1090, 0.0
  %v1172 = vmax.f32 %v1091, 0.0
  %v1173 = vmax.f32 %v1092, 0.0
  %v1174 = vmax.f32 %v1093, 0.0
  %v1175 = vmax.f32 %v1094, 0.0
  %v1176 = vmax.f32 %v1095, 0.0
  %v1177 = vmax.f32 %v1096, 0.0
  %v1178 = vmax.f32 %v1097, 0.0
  %v1179 = vmax.f32 %v1098, 0.0
  %v1180 = vmax.f32 %v1099, 0.0
  %v1181 = vmax.f32 %v1100, 0.0
  %v1182 = vmax.f32 %v1101, 0.0
  %v1183 = vmax.f32 %v1102, 0.0
  %v1184 = vmax.f32 %v1103, 0.0
  %v1185 = vmax.f32 %v1104, 0.0
  %v1186 = vmax.f32 %v1105, 0.0
  %v1187 = vmax.f32 %v1106, 0.0
  %v1188 = vmax.f32 %v1107, 0.0
  %v1189 = vmax.f32 %v1108, 0.0
  %v1190 = vmax.f32 %v1109, 0.0
  %v1191 = vmax.f32 %v1110, 0.0
  %v1192 = vmax.f32 %v1111, 0.0
  %v1193 = vmax.f32 %v1112, 0.0
  %v1194 = vmax.f32 %v1113, 0.0
  %v1195 = vmax.f32 %v1114, 0.0
  %v1196 = vmax.f32 %v1115, 0.0
  %v1197 = vmax.f32 %v1116, 0.0
  %v1198 = vmax.f32 %v1117, 0.0
  %v1199 = vmax.f32 %v1118, 0.0
  %v1200 = vmax.f32 %v1119, 0.0
  %v1201 = vmax.f32 %v1120, 0.0
  %v1202 = vmax.f32 %v1121, 0.0
  %v1203 = vmax.f32 %v1122, 0.0
  %v1204 = vmax.f32 %v1123, 0.0
  %v1205 = vmax.f32 %v1124, 0.0
  %v1206 = vmax.f32 %v1125, 0.0
  %v1207 = vmax.f32 %v1126, 0.0
  %v1208 = vmax.f32 %v1127, 0.0
  %v1209 = vmax.f32 %v1128, 0.0
  %v1210 = vmax.f32 %v1129, 0.0
  %v1211 = vmax.f32 %v1130, 0.0
  %v1212 = vmax.f32 %v1131, 0.0
  %v1213 = vmax.f32 %v1132, 0.0
  %v1214 = vmax.f32 %v1133, 0.0
  %v1215 = vmax.f32 %v1134, 0.0
  %v1216 = vpack.c.bf16 %v1135, %v1135
  %v1217 = vpack.c.bf16 %v1136, %v1136
  %v1218 = vpack.c.bf16 %v1137, %v1137
  %v1219 = vpack.c.bf16 %v1138, %v1138
  %v1220 = vpack.c.bf16 %v1139, %v1139
  %v1221 = vpack.c.bf16 %v1140, %v1140
  %v1222 = vpack.c.bf16 %v1141, %v1141
  %v1223 = vpack.c.bf16 %v1142, %v1142
  %v1224 = vpack.c.bf16 %v1143, %v1143
  %v1225 = vpack.c.bf16 %v1144, %v1144
  %v1226 = vpack.c.bf16 %v1145, %v1145
  %v1227 = vpack.c.bf16 %v1146, %v1146
  %v1228 = vpack.c.bf16 %v1147, %v1147
  %v1229 = vpack.c.bf16 %v1148, %v1148
  %v1230 = vpack.c.bf16 %v1149, %v1149
  %v1231 = vpack.c.bf16 %v1150, %v1150
  %v1232 = vpack.c.bf16 %v1151, %v1151
  %v1233 = vpack.c.bf16 %v1152, %v1152
  %v1234 = vpack.c.bf16 %v1153, %v1153
  %v1235 = vpack.c.bf16 %v1154, %v1154
  %v1236 = vpack.c.bf16 %v1155, %v1155
  %v1237 = vpack.c.bf16 %v1156, %v1156
  %v1238 = vpack.c.bf16 %v1157, %v1157
  %v1239 = vpack.c.bf16 %v1158, %v1158
  %v1240 = vpack.c.bf16 %v1159, %v1159
  %v1241 = vpack.c.bf16 %v1160, %v1160
  %v1242 = vpack.c.bf16 %v1161, %v1161
  %v1243 = vpack.c.bf16 %v1162, %v1162
  %v1244 = vpack.c.bf16 %v1163, %v1163
  %v1245 = vpack.c.bf16 %v1164, %v1164
  %v1246 = vpack.c.bf16 %v1165, %v1165
  %v1247 = vpack.c.bf16 %v1166, %v1166
  %v1248 = vpack.c.bf16 %v1167, %v1167
  %v1249 = vpack.c.bf16 %v1168, %v1168
  %v1250 = vpack.c.bf16 %v1169, %v1169
  %v1251 = vpack.c.bf16 %v1170, %v1170
  %v1252 = vpack.c.bf16 %v1171, %v1171
  %v1253 = vpack.c.bf16 %v1172, %v1172
  %v1254 = vpack.c.bf16 %v1173, %v1173
  %v1255 = vpack.c.bf16 %v1174, %v1174
  %v1256 = vpack.c.bf16 %v1175, %v1175
  %v1257 = vpack.c.bf16 %v1176, %v1176
  %v1258 = vpack.c.bf16 %v1177, %v1177
  %v1259 = vpack.c.bf16 %v1178, %v1178
  %v1260 = vpack.c.bf16 %v1179, %v1179
  %v1261 = vpack.c.bf16 %v1180, %v1180
  %v1262 = vpack.c.bf16 %v1181, %v1181
  %v1263 = vpack.c.bf16 %v1182, %v1182
  %v1264 = vpack.c.bf16 %v1183, %v1183
  %v1265 = vpack.c.bf16 %v1184, %v1184
  %v1266 = vpack.c.bf16 %v1185, %v1185
  %v1267 = vpack.c.bf16 %v1186, %v1186
  %v1268 = vpack.c.bf16 %v1187, %v1187
  %v1269 = vpack.c.bf16 %v1188, %v1188
  %v1270 = vpack.c.bf16 %v1189, %v1189
  %v1271 = vpack.c.bf16 %v1190, %v1190
  %v1272 = vpack.c.bf16 %v1191, %v1191
  %v1273 = vpack.c.bf16 %v1192, %v1192
  %v1274 = vpack.c.bf16 %v1193, %v1193
  %v1275 = vpack.c.bf16 %v1194, %v1194
  %v1276 = vpack.c.bf16 %v1195, %v1195
  %v1277 = vpack.c.bf16 %v1196, %v1196
  %v1278 = vpack.c.bf16 %v1197, %v1197
  %v1279 = vpack.c.bf16 %v1198, %v1198
  %v1280 = vpack.c.bf16 %v1199, %v1199
  %v1281 = vpack.c.bf16 %v1200, %v1200
  %v1282 = vpack.c.bf16 %v1201, %v1201
  %v1283 = vpack.c.bf16 %v1202, %v1202
  %v1284 = vpack.c.bf16 %v1203, %v1203
  %v1285 = vpack.c.bf16 %v1204, %v1204
  %v1286 = vpack.c.bf16 %v1205, %v1205
  %v1287 = vpack.c.bf16 %v1206, %v1206
  %v1288 = vpack.c.bf16 %v1207, %v1207
  %v1289 = vpack.c.bf16 %v1208, %v1208
  %v1290 = vpack.c.bf16 %v1209, %v1209
  %v1291 = vpack.c.bf16 %v1210, %v1210
  %v1292 = vpack.c.bf16 %v1211, %v1211
  %v1293 = vpack.c.bf16 %v1212, %v1212
  %v1294 = vpack.c.bf16 %v1213, %v1213
  %v1295 = vpack.c.bf16 %v1214, %v1214
  %v1296 = vpack.c.bf16 %v1215, %v1215
  %vm1297 = vcmask 125952
  %1298 = vst.msk [vmem:[%s4] sm:$0xf] %vm1297, %v1216
  %1299 = vst.msk [vmem:[%s4 + $0x4] sm:$0xf] %vm1297, %v1217
  %1300 = vst.msk [vmem:[%s4 + $0x8] sm:$0xf] %vm1297, %v1218
  %1301 = vst.msk [vmem:[%s4 + $0xc] sm:$0xf] %vm1297, %v1219
  %1302 = vst.msk [vmem:[%s4 + $0x10] sm:$0xf] %vm1297, %v1220
  %1303 = vst.msk [vmem:[%s4 + $0x14] sm:$0xf] %vm1297, %v1221
  %1304 = vst.msk [vmem:[%s4 + $0x18] sm:$0xf] %vm1297, %v1222
  %1305 = vst.msk [vmem:[%s4 + $0x1c] sm:$0xf] %vm1297, %v1223
  %1306 = vst.msk [vmem:[%s4 + $0x20] sm:$0xf] %vm1297, %v1224
  %1307 = vst.msk [vmem:[%s4 + $0x24] sm:$0xf] %vm1297, %v1225
  %1308 = vst.msk [vmem:[%s4 + $0x28] sm:$0xf] %vm1297, %v1226
  %1309 = vst.msk [vmem:[%s4 + $0x2c] sm:$0xf] %vm1297, %v1227
  %1310 = vst.msk [vmem:[%s4 + $0x30] sm:$0xf] %vm1297, %v1228
  %1311 = vst.msk [vmem:[%s4 + $0x34] sm:$0xf] %vm1297, %v1229
  %1312 = vst.msk [vmem:[%s4 + $0x38] sm:$0xf] %vm1297, %v1230
  %1313 = vst.msk [vmem:[%s4 + $0x3c] sm:$0xf] %vm1297, %v1231
  %1314 = vst.msk [vmem:[%s4 + $0x40] sm:$0xf] %vm1297, %v1232
  %1315 = vst.msk [vmem:[%s4 + $0x44] sm:$0xf] %vm1297, %v1233
  %1316 = vst.msk [vmem:[%s4 + $0x48] sm:$0xf] %vm1297, %v1234
  %1317 = vst.msk [vmem:[%s4 + $0x4c] sm:$0xf] %vm1297, %v1235
  %1318 = vst.msk [vmem:[%s4 + $0x50] sm:$0xf] %vm1297, %v1236
  %1319 = vst.msk [vmem:[%s4 + $0x54] sm:$0xf] %vm1297, %v1237
  %1320 = vst.msk [vmem:[%s4 + $0x58] sm:$0xf] %vm1297, %v1238
  %1321 = vst.msk [vmem:[%s4 + $0x5c] sm:$0xf] %vm1297, %v1239
  %1322 = vst.msk [vmem:[%s4 + $0x60] sm:$0xf] %vm1297, %v1240
  %1323 = vst.msk [vmem:[%s4 + $0x64] sm:$0xf] %vm1297, %v1241
  %1324 = vst.msk [vmem:[%s4 + $0x68] sm:$0xf] %vm1297, %v1242
  %1325 = vst.msk [vmem:[%s4 + $0x6c] sm:$0xf] %vm1297, %v1243
  %1326 = vst.msk [vmem:[%s4 + $0x70] sm:$0xf] %vm1297, %v1244
  %1327 = vst.msk [vmem:[%s4 + $0x74] sm:$0xf] %vm1297, %v1245
  %1328 = vst.msk [vmem:[%s4 + $0x78] sm:$0xf] %vm1297, %v1246
  %1329 = vst.msk [vmem:[%s4 + $0x7c] sm:$0xf] %vm1297, %v1247
  %1330 = vst.msk [vmem:[%s4 + $0x80] sm:$0xf] %vm1297, %v1248
  %1331 = vst.msk [vmem:[%s4 + $0x84] sm:$0xf] %vm1297, %v1249
  %1332 = vst.msk [vmem:[%s4 + $0x88] sm:$0xf] %vm1297, %v1250
  %1333 = vst.msk [vmem:[%s4 + $0x8c] sm:$0xf] %vm1297, %v1251
  %1334 = vst.msk [vmem:[%s4 + $0x90] sm:$0xf] %vm1297, %v1252
  %1335 = vst.msk [vmem:[%s4 + $0x94] sm:$0xf] %vm1297, %v1253
  %1336 = vst.msk [vmem:[%s4 + $0x98] sm:$0xf] %vm1297, %v1254
  %1337 = vst.msk [vmem:[%s4 + $0x9c] sm:$0xf] %vm1297, %v1255
  %1338 = vst.msk [vmem:[%s4 + $0xa0] sm:$0xf] %vm1297, %v1256
  %1339 = vst.msk [vmem:[%s4 + $0xa4] sm:$0xf] %vm1297, %v1257
  %1340 = vst.msk [vmem:[%s4 + $0xa8] sm:$0xf] %vm1297, %v1258
  %1341 = vst.msk [vmem:[%s4 + $0xac] sm:$0xf] %vm1297, %v1259
  %1342 = vst.msk [vmem:[%s4 + $0xb0] sm:$0xf] %vm1297, %v1260
  %1343 = vst.msk [vmem:[%s4 + $0xb4] sm:$0xf] %vm1297, %v1261
  %1344 = vst.msk [vmem:[%s4 + $0xb8] sm:$0xf] %vm1297, %v1262
  %1345 = vst.msk [vmem:[%s4 + $0xbc] sm:$0xf] %vm1297, %v1263
  %1346 = vst.msk [vmem:[%s4 + $0xc0] sm:$0xf] %vm1297, %v1264
  %1347 = vst.msk [vmem:[%s4 + $0xc4] sm:$0xf] %vm1297, %v1265
  %1348 = vst.msk [vmem:[%s4 + $0xc8] sm:$0xf] %vm1297, %v1266
  %1349 = vst.msk [vmem:[%s4 + $0xcc] sm:$0xf] %vm1297, %v1267
  %1350 = vst.msk [vmem:[%s4 + $0xd0] sm:$0xf] %vm1297, %v1268
  %1351 = vst.msk [vmem:[%s4 + $0xd4] sm:$0xf] %vm1297, %v1269
  %1352 = vst.msk [vmem:[%s4 + $0xd8] sm:$0xf] %vm1297, %v1270
  %1353 = vst.msk [vmem:[%s4 + $0xdc] sm:$0xf] %vm1297, %v1271
  %1354 = vst.msk [vmem:[%s4 + $0xe0] sm:$0xf] %vm1297, %v1272
  %1355 = vst.msk [vmem:[%s4 + $0xe4] sm:$0xf] %vm1297, %v1273
  %1356 = vst.msk [vmem:[%s4 + $0xe8] sm:$0xf] %vm1297, %v1274
  %1357 = vst.msk [vmem:[%s4 + $0xec] sm:$0xf] %vm1297, %v1275
  %1358 = vst.msk [vmem:[%s4 + $0xf0] sm:$0xf] %vm1297, %v1276
  %1359 = vst.msk [vmem:[%s4 + $0xf4] sm:$0xf] %vm1297, %v1277
  %1360 = vst.msk [vmem:[%s4 + $0xf8] sm:$0xf] %vm1297, %v1278
  %1361 = vst.msk [vmem:[%s4 + $0xfc] sm:$0xf] %vm1297, %v1279
  %1362 = vst.msk [vmem:[%s4 + $0x100] sm:$0xf] %vm1297, %v1280
  %1363 = vst.msk [vmem:[%s4 + $0x104] sm:$0xf] %vm1297, %v1281
  %1364 = vst.msk [vmem:[%s4 + $0x108] sm:$0xf] %vm1297, %v1282
  %1365 = vst.msk [vmem:[%s4 + $0x10c] sm:$0xf] %vm1297, %v1283
  %1366 = vst.msk [vmem:[%s4 + $0x110] sm:$0xf] %vm1297, %v1284
  %1367 = vst.msk [vmem:[%s4 + $0x114] sm:$0xf] %vm1297, %v1285
  %1368 = vst.msk [vmem:[%s4 + $0x118] sm:$0xf] %vm1297, %v1286
  %1369 = vst.msk [vmem:[%s4 + $0x11c] sm:$0xf] %vm1297, %v1287
  %1370 = vst.msk [vmem:[%s4 + $0x120] sm:$0xf] %vm1297, %v1288
  %1371 = vst.msk [vmem:[%s4 + $0x124] sm:$0xf] %vm1297, %v1289
  %1372 = vst.msk [vmem:[%s4 + $0x128] sm:$0xf] %vm1297, %v1290
  %1373 = vst.msk [vmem:[%s4 + $0x12c] sm:$0xf] %vm1297, %v1291
  %1374 = vst.msk [vmem:[%s4 + $0x130] sm:$0xf] %vm1297, %v1292
  %1375 = vst.msk [vmem:[%s4 + $0x134] sm:$0xf] %vm1297, %v1293
  %1376 = vst.msk [vmem:[%s4 + $0x138] sm:$0xf] %vm1297, %v1294
  %1377 = vst.msk [vmem:[%s4 + $0x13c] sm:$0xf] %vm1297, %v1295
  %1378 = vst.msk [vmem:[%s4 + $0x140] sm:$0xf] %vm1297, %v1296
  // Predicated region
  $region18: #{dqn_forward.3} parent=0 // pred_check
    _
  $region19: #{dqn_forward.3} parent=0 // pred_check_branch
    %1380 = sbr.rel (0) target = $region21
  $region20: #{dqn_forward.3} parent=0 // pred_region
    _
  $region21: #{dqn_forward.3} parent=0 // pred_fallthru
    _
  // Predicated region
  $region22: #{dqn_forward.3} parent=0 // pred_check
    _
  $region23: #{dqn_forward.3} parent=0 // pred_check_branch
    %1382 = sbr.rel (0) target = $region25
  $region24: #{dqn_forward.3} parent=0 // pred_region
    _
  $region25: #{dqn_forward.3} parent=0 // pred_fallthru
    _

// kernel: dqn_forward.4
$region0: #{dqn_forward.4}
  #allocation0 [shape = 'u32[]', space=smem, size = 0x4, offset = 0x4, fixed_abs, tag = 'smem constant byte address 0x4 - core index']
  #allocation1 [shape = 'u32[72,128]{1,0:T(1,128)}', space=vmem, size = 0x9000, scoped, tag = 'internal scratch']
  %s0 = inlined_call_operand.vmem [shape: bf16[98,512], index: 0, kind: input, shape index: {}]
  %s1 = inlined_call_operand.vmem [shape: bf16[512,128], index: 1, kind: input, shape index: {}]
  %s2 = inlined_call_operand.vmem [shape: f32[1,128], index: 2, kind: input, shape index: {}]
  %s3 = inlined_call_operand.vmem [shape: f32[1,128], index: 3, kind: input, shape index: {}]
  %s4 = inlined_call_operand.vmem [shape: bf16[98,32], index: 4, kind: output, shape index: {}]
  %s5 = sld [smem:[#allocation0]]
  $region26: #{dqn_forward.4} parent=0
    _
  %s7 = ssub.s32 1, %s5
  %s8 = scalar_select 0, %s7, %s5
  // Predicated region
  $region2: #{dqn_forward.4} parent=0 // pred_check
    _
  $region3: #{dqn_forward.4} parent=0 // pred_check_branch
    %10 = sbr.rel (0) target = $region5
  $region4: #{dqn_forward.4} parent=0 // pred_region
    _
  $region5: #{dqn_forward.4} parent=0 // pred_fallthru
    _
  // Predicated region
  $region6: #{dqn_forward.4} parent=0 // pred_check
    _
  $region7: #{dqn_forward.4} parent=0 // pred_check_branch
    %12 = sbr.rel (0) target = $region9
  $region8: #{dqn_forward.4} parent=0 // pred_region
    _
  $region9: #{dqn_forward.4} parent=0 // pred_fallthru
    _
  // Predicated region
  $region10: #{dqn_forward.4} parent=0 // pred_check
    _
  $region11: #{dqn_forward.4} parent=0 // pred_check_branch
    %14 = sbr.rel (0) target = $region13
  $region12: #{dqn_forward.4} parent=0 // pred_region
    _
  $region13: #{dqn_forward.4} parent=0 // pred_fallthru
    _
  // Predicated region
  $region14: #{dqn_forward.4} parent=0 // pred_check
    _
  $region15: #{dqn_forward.4} parent=0 // pred_check_branch
    %16 = sbr.rel (0) target = $region17
  $region16: #{dqn_forward.4} parent=0 // pred_region
    _
  $region17: #{dqn_forward.4} parent=0 // pred_fallthru
    _
  %v17 = vld [vmem:[%s0] sm:$0xff]
  %v18 = vld [vmem:[%s0 + $0x8] sm:$0xff]
  %v19 = vld [vmem:[%s0 + $0x10] sm:$0xff]
  %v20 = vld [vmem:[%s0 + $0x18] sm:$0xff]
  %v21 = vld [vmem:[%s0 + $0x20] sm:$0xff]
  %v22 = vld [vmem:[%s0 + $0x28] sm:$0xff]
  %v23 = vld [vmem:[%s0 + $0x30] sm:$0xff]
  %v24 = vld [vmem:[%s0 + $0x38] sm:$0xff]
  %v25 = vld [vmem:[%s0 + $0x40] sm:$0xff]
  %v26 = vld [vmem:[%s0 + $0x48] sm:$0xff]
  %v27 = vld [vmem:[%s0 + $0x50] sm:$0xff]
  %v28 = vld [vmem:[%s0 + $0x58] sm:$0xff]
  %v29 = vld [vmem:[%s0 + $0x60] sm:$0xff]
  %v30 = vld [vmem:[%s0 + $0x68] sm:$0xff]
  %v31 = vld [vmem:[%s0 + $0x70] sm:$0xff]
  %v32 = vld [vmem:[%s0 + $0x78] sm:$0xff]
  %v33 = vld [vmem:[%s0 + $0x80] sm:$0xff]
  %v34 = vld [vmem:[%s0 + $0x88] sm:$0xff]
  %v35 = vld [vmem:[%s0 + $0x90] sm:$0xff]
  %v36 = vld [vmem:[%s0 + $0x98] sm:$0xff]
  %v37 = vld [vmem:[%s0 + $0xa0] sm:$0xff]
  %v38 = vld [vmem:[%s0 + $0xa8] sm:$0xff]
  %v39 = vld [vmem:[%s0 + $0xb0] sm:$0xff]
  %v40 = vld [vmem:[%s0 + $0xb8] sm:$0xff]
  %v41 = vld [vmem:[%s0 + $0xc0] sm:$0x11]
  %v42 = vld [vmem:[%s0 + $0xc8] sm:$0x11]
  %v43 = vld [vmem:[%s1] sm:$0xf]
  %v44 = vld [vmem:[%s1 + $0x4] sm:$0xf]
  %v45 = vld [vmem:[%s1 + $0x8] sm:$0xf]
  %v46 = vld [vmem:[%s1 + $0xc] sm:$0xf]
  %v47 = vld [vmem:[%s1 + $0x10] sm:$0xf]
  %v48 = vld [vmem:[%s1 + $0x14] sm:$0xf]
  %v49 = vld [vmem:[%s1 + $0x18] sm:$0xf]
  %v50 = vld [vmem:[%s1 + $0x1c] sm:$0xf]
  %v51 = vld [vmem:[%s1 + $0x20] sm:$0xf]
  %v52 = vld [vmem:[%s1 + $0x24] sm:$0xf]
  %v53 = vld [vmem:[%s1 + $0x28] sm:$0xf]
  %v54 = vld [vmem:[%s1 + $0x2c] sm:$0xf]
  %v55 = vld [vmem:[%s1 + $0x30] sm:$0xf]
  %v56 = vld [vmem:[%s1 + $0x34] sm:$0xf]
  %v57 = vld [vmem:[%s1 + $0x38] sm:$0xf]
  %v58 = vld [vmem:[%s1 + $0x3c] sm:$0xf]
  %v59 = vld [vmem:[%s1 + $0x40] sm:$0xf]
  %v60 = vld [vmem:[%s1 + $0x44] sm:$0xf]
  %v61 = vld [vmem:[%s1 + $0x48] sm:$0xf]
  %v62 = vld [vmem:[%s1 + $0x4c] sm:$0xf]
  %v63 = vld [vmem:[%s1 + $0x50] sm:$0xf]
  %v64 = vld [vmem:[%s1 + $0x54] sm:$0xf]
  %v65 = vld [vmem:[%s1 + $0x58] sm:$0xf]
  %v66 = vld [vmem:[%s1 + $0x5c] sm:$0xf]
  %v67 = vld [vmem:[%s1 + $0x60] sm:$0xf]
  %v68 = vld [vmem:[%s1 + $0x64] sm:$0xf]
  %v69 = vld [vmem:[%s1 + $0x68] sm:$0xf]
  %v70 = vld [vmem:[%s1 + $0x6c] sm:$0xf]
  %v71 = vld [vmem:[%s1 + $0x70] sm:$0xf]
  %v72 = vld [vmem:[%s1 + $0x74] sm:$0xf]
  %v73 = vld [vmem:[%s1 + $0x78] sm:$0xf]
  %v74 = vld [vmem:[%s1 + $0x7c] sm:$0xf]
  %v75 = vld [vmem:[%s1 + $0x80] sm:$0xf]
  %v76 = vld [vmem:[%s1 + $0x84] sm:$0xf]
  %v77 = vld [vmem:[%s1 + $0x88] sm:$0xf]
  %v78 = vld [vmem:[%s1 + $0x8c] sm:$0xf]
  %v79 = vld [vmem:[%s1 + $0x90] sm:$0xf]
  %v80 = vld [vmem:[%s1 + $0x94] sm:$0xf]
  %v81 = vld [vmem:[%s1 + $0x98] sm:$0xf]
  %v82 = vld [vmem:[%s1 + $0x9c] sm:$0xf]
  %v83 = vld [vmem:[%s1 + $0xa0] sm:$0xf]
  %v84 = vld [vmem:[%s1 + $0xa4] sm:$0xf]
  %v85 = vld [vmem:[%s1 + $0xa8] sm:$0xf]
  %v86 = vld [vmem:[%s1 + $0xac] sm:$0xf]
  %v87 = vld [vmem:[%s1 + $0xb0] sm:$0xf]
  %v88 = vld [vmem:[%s1 + $0xb4] sm:$0xf]
  %v89 = vld [vmem:[%s1 + $0xb8] sm:$0xf]
  %v90 = vld [vmem:[%s1 + $0xbc] sm:$0xf]
  %v91 = vld [vmem:[%s1 + $0xc0] sm:$0xf]
  %v92 = vld [vmem:[%s1 + $0xc4] sm:$0xf]
  %v93 = vld [vmem:[%s1 + $0xc8] sm:$0xf]
  %v94 = vld [vmem:[%s1 + $0xcc] sm:$0xf]
  %v95 = vld [vmem:[%s1 + $0xd0] sm:$0xf]
  %v96 = vld [vmem:[%s1 + $0xd4] sm:$0xf]
  %v97 = vld [vmem:[%s1 + $0xd8] sm:$0xf]
  %v98 = vld [vmem:[%s1 + $0xdc] sm:$0xf]
  %v99 = vld [vmem:[%s1 + $0xe0] sm:$0xf]
  %v100 = vld [vmem:[%s1 + $0xe4] sm:$0xf]
  %v101 = vld [vmem:[%s1 + $0xe8] sm:$0xf]
  %v102 = vld [vmem:[%s1 + $0xec] sm:$0xf]
  %v103 = vld [vmem:[%s1 + $0xf0] sm:$0xf]
  %v104 = vld [vmem:[%s1 + $0xf4] sm:$0xf]
  %v105 = vld [vmem:[%s1 + $0xf8] sm:$0xf]
  %v106 = vld [vmem:[%s1 + $0xfc] sm:$0xf]
  %v133 = vunpack.c.l.b16 %v17
  %v134 = vunpack.c.h.b16 %v17
  %v135 = vunpack.c.l.b16 %v18
  %v136 = vunpack.c.h.b16 %v18
  %v137 = vunpack.c.l.b16 %v19
  %v138 = vunpack.c.h.b16 %v19
  %v139 = vunpack.c.l.b16 %v20
  %v140 = vunpack.c.h.b16 %v20
  %v141 = vunpack.c.l.b16 %v21
  %v142 = vunpack.c.h.b16 %v21
  %v143 = vunpack.c.l.b16 %v22
  %v144 = vunpack.c.h.b16 %v22
  %v145 = vunpack.c.l.b16 %v23
  %v146 = vunpack.c.h.b16 %v23
  %v147 = vunpack.c.l.b16 %v24
  %v148 = vunpack.c.h.b16 %v24
  %v149 = vunpack.c.l.b16 %v25
  %v150 = vunpack.c.h.b16 %v25
  %v151 = vunpack.c.l.b16 %v26
  %v152 = vunpack.c.h.b16 %v26
  %v153 = vunpack.c.l.b16 %v27
  %v154 = vunpack.c.h.b16 %v27
  %v155 = vunpack.c.l.b16 %v28
  %v156 = vunpack.c.h.b16 %v28
  %v157 = vunpack.c.l.b16 %v29
  %v158 = vunpack.c.h.b16 %v29
  %v159 = vunpack.c.l.b16 %v30
  %v160 = vunpack.c.h.b16 %v30
  %v161 = vunpack.c.l.b16 %v31
  %v162 = vunpack.c.h.b16 %v31
  %v163 = vunpack.c.l.b16 %v32
  %v164 = vunpack.c.h.b16 %v32
  %v165 = vunpack.c.l.b16 %v33
  %v166 = vunpack.c.h.b16 %v33
  %v167 = vunpack.c.l.b16 %v34
  %v168 = vunpack.c.h.b16 %v34
  %v169 = vunpack.c.l.b16 %v35
  %v170 = vunpack.c.h.b16 %v35
  %v171 = vunpack.c.l.b16 %v36
  %v172 = vunpack.c.h.b16 %v36
  %v173 = vunpack.c.l.b16 %v37
  %v174 = vunpack.c.h.b16 %v37
  %v175 = vunpack.c.l.b16 %v38
  %v176 = vunpack.c.h.b16 %v38
  %v177 = vunpack.c.l.b16 %v39
  %v178 = vunpack.c.h.b16 %v39
  %v179 = vunpack.c.l.b16 %v40
  %v180 = vunpack.c.h.b16 %v40
  %v181 = vunpack.c.l.b16 %v41
  %v182 = vunpack.c.h.b16 %v41
  %v183 = vunpack.c.l.b16 %v42
  %v184 = vunpack.c.h.b16 %v42
  %v185 = vpack.c.b16 %v137, %v133
  %v186 = vpack.c.b16 %v138, %v134
  %v187 = vpack.c.b16 %v139, %v135
  %v188 = vpack.c.b16 %v140, %v136
  %v189 = vpack.c.b16 %v145, %v141
  %v190 = vpack.c.b16 %v146, %v142
  %v191 = vpack.c.b16 %v147, %v143
  %v192 = vpack.c.b16 %v148, %v144
  %v193 = vpack.c.b16 %v153, %v149
  %v194 = vpack.c.b16 %v154, %v150
  %v195 = vpack.c.b16 %v155, %v151
  %v196 = vpack.c.b16 %v156, %v152
  %v197 = vpack.c.b16 %v161, %v157
  %v198 = vpack.c.b16 %v162, %v158
  %v199 = vpack.c.b16 %v163, %v159
  %v200 = vpack.c.b16 %v164, %v160
  %v201 = vpack.c.b16 %v169, %v165
  %v202 = vpack.c.b16 %v170, %v166
  %v203 = vpack.c.b16 %v171, %v167
  %v204 = vpack.c.b16 %v172, %v168
  %v205 = vpack.c.b16 %v177, %v173
  %v206 = vpack.c.b16 %v178, %v174
  %v207 = vpack.c.b16 %v179, %v175
  %v208 = vpack.c.b16 %v180, %v176
  %v209 = vpack.c.b16 %v181, %v181
  %v210 = vpack.c.b16 %v182, %v182
  %v211 = vpack.c.b16 %v183, %v183
  %v212 = vpack.c.b16 %v184, %v184
  %v305 = vunpack.c.l.b16 %v43
  %v306 = vunpack.c.l.b16 %v44
  %v307 = vunpack.c.l.b16 %v45
  %v308 = vunpack.c.l.b16 %v46
  %v309 = vunpack.c.l.b16 %v47
  %v310 = vunpack.c.l.b16 %v48
  %v311 = vunpack.c.l.b16 %v49
  %v312 = vunpack.c.l.b16 %v50
  %v313 = vunpack.c.l.b16 %v51
  %v314 = vunpack.c.l.b16 %v52
  %v315 = vunpack.c.l.b16 %v53
  %v316 = vunpack.c.l.b16 %v54
  %v317 = vunpack.c.l.b16 %v55
  %v318 = vunpack.c.l.b16 %v56
  %v319 = vunpack.c.l.b16 %v57
  %v320 = vunpack.c.l.b16 %v58
  %v321 = vunpack.c.l.b16 %v59
  %v322 = vunpack.c.l.b16 %v60
  %v323 = vunpack.c.l.b16 %v61
  %v324 = vunpack.c.l.b16 %v62
  %v325 = vunpack.c.l.b16 %v63
  %v326 = vunpack.c.l.b16 %v64
  %v327 = vunpack.c.l.b16 %v65
  %v328 = vunpack.c.l.b16 %v66
  %v329 = vunpack.c.l.b16 %v67
  %v330 = vunpack.c.l.b16 %v68
  %v331 = vunpack.c.l.b16 %v69
  %v332 = vunpack.c.l.b16 %v70
  %v333 = vunpack.c.l.b16 %v71
  %v334 = vunpack.c.l.b16 %v72
  %v335 = vunpack.c.l.b16 %v73
  %v336 = vunpack.c.l.b16 %v74
  %v337 = vunpack.c.l.b16 %v75
  %v338 = vunpack.c.l.b16 %v76
  %v339 = vunpack.c.l.b16 %v77
  %v340 = vunpack.c.l.b16 %v78
  %v341 = vunpack.c.l.b16 %v79
  %v342 = vunpack.c.l.b16 %v80
  %v343 = vunpack.c.l.b16 %v81
  %v344 = vunpack.c.l.b16 %v82
  %v345 = vunpack.c.l.b16 %v83
  %v346 = vunpack.c.l.b16 %v84
  %v347 = vunpack.c.l.b16 %v85
  %v348 = vunpack.c.l.b16 %v86
  %v349 = vunpack.c.l.b16 %v87
  %v350 = vunpack.c.l.b16 %v88
  %v351 = vunpack.c.l.b16 %v89
  %v352 = vunpack.c.l.b16 %v90
  %v353 = vunpack.c.l.b16 %v91
  %v354 = vunpack.c.l.b16 %v92
  %v355 = vunpack.c.l.b16 %v93
  %v356 = vunpack.c.l.b16 %v94
  %v357 = vunpack.c.l.b16 %v95
  %v358 = vunpack.c.l.b16 %v96
  %v359 = vunpack.c.l.b16 %v97
  %v360 = vunpack.c.l.b16 %v98
  %v361 = vunpack.c.l.b16 %v99
  %v362 = vunpack.c.l.b16 %v100
  %v363 = vunpack.c.l.b16 %v101
  %v364 = vunpack.c.l.b16 %v102
  %v365 = vunpack.c.l.b16 %v103
  %v366 = vunpack.c.l.b16 %v104
  %v367 = vunpack.c.l.b16 %v105
  %v368 = vunpack.c.l.b16 %v106
  %v369 = vpack.c.b16 %v306, %v305
  %v370 = vpack.c.b16 %v308, %v307
  %v371 = vpack.c.b16 %v310, %v309
  %v372 = vpack.c.b16 %v312, %v311
  %v373 = vpack.c.b16 %v314, %v313
  %v374 = vpack.c.b16 %v316, %v315
  %v375 = vpack.c.b16 %v318, %v317
  %v376 = vpack.c.b16 %v320, %v319
  %v377 = vpack.c.b16 %v322, %v321
  %v378 = vpack.c.b16 %v324, %v323
  %v379 = vpack.c.b16 %v326, %v325
  %v380 = vpack.c.b16 %v328, %v327
  %v381 = vpack.c.b16 %v330, %v329
  %v382 = vpack.c.b16 %v332, %v331
  %v383 = vpack.c.b16 %v334, %v333
  %v384 = vpack.c.b16 %v336, %v335
  %v385 = vpack.c.b16 %v338, %v337
  %v386 = vpack.c.b16 %v340, %v339
  %v387 = vpack.c.b16 %v342, %v341
  %v388 = vpack.c.b16 %v344, %v343
  %v389 = vpack.c.b16 %v346, %v345
  %v390 = vpack.c.b16 %v348, %v347
  %v391 = vpack.c.b16 %v350, %v349
  %v392 = vpack.c.b16 %v352, %v351
  %v393 = vpack.c.b16 %v354, %v353
  %v394 = vpack.c.b16 %v356, %v355
  %v395 = vpack.c.b16 %v358, %v357
  %v396 = vpack.c.b16 %v360, %v359
  %v397 = vpack.c.b16 %v362, %v361
  %v398 = vpack.c.b16 %v364, %v363
  %v399 = vpack.c.b16 %v366, %v365
  %v400 = vpack.c.b16 %v368, %v367
  %433 = vmatpush.bf16.msra.mxu0 %v376
  %434 = vmatpush.bf16.msra.mxu0 %v375
  %435 = vmatpush.bf16.msra.mxu0 %v374
  %436 = vmatpush.bf16.msra.mxu0 %v373
  %437 = vmatpush.bf16.msra.mxu0 %v372
  %438 = vmatpush.bf16.msra.mxu0 %v371
  %439 = vmatpush.bf16.msra.mxu0 %v370
  %440 = vmatpush.bf16.msra.mxu0 %v369
  %441 = vmatmul.bf16.gmra.mxu0 %v185
  %v442 = vpop.f32.mrf.mxu0
  %v443 = vadd.f32 0.0, %v442
  %v444 = vpop.f32.mrf.mxu0
  %v445 = vadd.f32 0.0, %v444
  %446 = vmatmul.bf16.gmra.mxu0 %v189
  %v447 = vpop.f32.mrf.mxu0
  %v448 = vadd.f32 0.0, %v447
  %v449 = vpop.f32.mrf.mxu0
  %v450 = vadd.f32 0.0, %v449
  %451 = vmatmul.bf16.gmra.mxu0 %v193
  %v452 = vpop.f32.mrf.mxu0
  %v453 = vadd.f32 0.0, %v452
  %v454 = vpop.f32.mrf.mxu0
  %v455 = vadd.f32 0.0, %v454
  %456 = vmatmul.bf16.gmra.mxu0 %v197
  %v457 = vpop.f32.mrf.mxu0
  %v458 = vadd.f32 0.0, %v457
  %v459 = vpop.f32.mrf.mxu0
  %v460 = vadd.f32 0.0, %v459
  %461 = vmatmul.bf16.gmra.mxu0 %v201
  %v462 = vpop.f32.mrf.mxu0
  %v463 = vadd.f32 0.0, %v462
  %v464 = vpop.f32.mrf.mxu0
  %v465 = vadd.f32 0.0, %v464
  %466 = vmatmul.bf16.gmra.mxu0 %v205
  %v467 = vpop.f32.mrf.mxu0
  %v468 = vadd.f32 0.0, %v467
  %v469 = vpop.f32.mrf.mxu0
  %v470 = vadd.f32 0.0, %v469
  %471 = vmatmul.bf16.gmra.mxu0 %v209
  %v472 = vpop.f32.mrf.mxu0
  %v473 = vadd.f32 0.0, %v472
  %v474 = vpop.f32.mrf.mxu0
  %475 = vdwg.mxu0
  %476 = vmatpush.bf16.msra.mxu0 %v384
  %477 = vmatpush.bf16.msra.mxu0 %v383
  %478 = vmatpush.bf16.msra.mxu0 %v382
  %479 = vmatpush.bf16.msra.mxu0 %v381
  %480 = vmatpush.bf16.msra.mxu0 %v380
  %481 = vmatpush.bf16.msra.mxu0 %v379
  %482 = vmatpush.bf16.msra.mxu0 %v378
  %483 = vmatpush.bf16.msra.mxu0 %v377
  %484 = vmatmul.bf16.gmra.mxu0 %v186
  %v485 = vpop.f32.mrf.mxu0
  %v486 = vadd.f32 %v443, %v485
  %v487 = vpop.f32.mrf.mxu0
  %v488 = vadd.f32 %v445, %v487
  %489 = vmatmul.bf16.gmra.mxu0 %v190
  %v490 = vpop.f32.mrf.mxu0
  %v491 = vadd.f32 %v448, %v490
  %v492 = vpop.f32.mrf.mxu0
  %v493 = vadd.f32 %v450, %v492
  %494 = vmatmul.bf16.gmra.mxu0 %v194
  %v495 = vpop.f32.mrf.mxu0
  %v496 = vadd.f32 %v453, %v495
  %v497 = vpop.f32.mrf.mxu0
  %v498 = vadd.f32 %v455, %v497
  %499 = vmatmul.bf16.gmra.mxu0 %v198
  %v500 = vpop.f32.mrf.mxu0
  %v501 = vadd.f32 %v458, %v500
  %v502 = vpop.f32.mrf.mxu0
  %v503 = vadd.f32 %v460, %v502
  %504 = vmatmul.bf16.gmra.mxu0 %v202
  %v505 = vpop.f32.mrf.mxu0
  %v506 = vadd.f32 %v463, %v505
  %v507 = vpop.f32.mrf.mxu0
  %v508 = vadd.f32 %v465, %v507
  %509 = vmatmul.bf16.gmra.mxu0 %v206
  %v510 = vpop.f32.mrf.mxu0
  %v511 = vadd.f32 %v468, %v510
  %v512 = vpop.f32.mrf.mxu0
  %v513 = vadd.f32 %v470, %v512
  %514 = vmatmul.bf16.gmra.mxu0 %v210
  %v515 = vpop.f32.mrf.mxu0
  %v516 = vadd.f32 %v473, %v515
  %v517 = vpop.f32.mrf.mxu0
  %518 = vdwg.mxu0
  %519 = vmatpush.bf16.msra.mxu0 %v392
  %520 = vmatpush.bf16.msra.mxu0 %v391
  %521 = vmatpush.bf16.msra.mxu0 %v390
  %522 = vmatpush.bf16.msra.mxu0 %v389
  %523 = vmatpush.bf16.msra.mxu0 %v388
  %524 = vmatpush.bf16.msra.mxu0 %v387
  %525 = vmatpush.bf16.msra.mxu0 %v386
  %526 = vmatpush.bf16.msra.mxu0 %v385
  %527 = vmatmul.bf16.gmra.mxu0 %v187
  %v528 = vpop.f32.mrf.mxu0
  %v529 = vadd.f32 %v486, %v528
  %v530 = vpop.f32.mrf.mxu0
  %v531 = vadd.f32 %v488, %v530
  %532 = vmatmul.bf16.gmra.mxu0 %v191
  %v533 = vpop.f32.mrf.mxu0
  %v534 = vadd.f32 %v491, %v533
  %v535 = vpop.f32.mrf.mxu0
  %v536 = vadd.f32 %v493, %v535
  %537 = vmatmul.bf16.gmra.mxu0 %v195
  %v538 = vpop.f32.mrf.mxu0
  %v539 = vadd.f32 %v496, %v538
  %v540 = vpop.f32.mrf.mxu0
  %v541 = vadd.f32 %v498, %v540
  %542 = vmatmul.bf16.gmra.mxu0 %v199
  %v543 = vpop.f32.mrf.mxu0
  %v544 = vadd.f32 %v501, %v543
  %v545 = vpop.f32.mrf.mxu0
  %v546 = vadd.f32 %v503, %v545
  %547 = vmatmul.bf16.gmra.mxu0 %v203
  %v548 = vpop.f32.mrf.mxu0
  %v549 = vadd.f32 %v506, %v548
  %v550 = vpop.f32.mrf.mxu0
  %v551 = vadd.f32 %v508, %v550
  %552 = vmatmul.bf16.gmra.mxu0 %v207
  %v553 = vpop.f32.mrf.mxu0
  %v554 = vadd.f32 %v511, %v553
  %v555 = vpop.f32.mrf.mxu0
  %v556 = vadd.f32 %v513, %v555
  %557 = vmatmul.bf16.gmra.mxu0 %v211
  %v558 = vpop.f32.mrf.mxu0
  %v559 = vadd.f32 %v516, %v558
  %v560 = vpop.f32.mrf.mxu0
  %561 = vdwg.mxu0
  %562 = vmatpush.bf16.msra.mxu0 %v400
  %563 = vmatpush.bf16.msra.mxu0 %v399
  %564 = vmatpush.bf16.msra.mxu0 %v398
  %565 = vmatpush.bf16.msra.mxu0 %v397
  %566 = vmatpush.bf16.msra.mxu0 %v396
  %567 = vmatpush.bf16.msra.mxu0 %v395
  %568 = vmatpush.bf16.msra.mxu0 %v394
  %569 = vmatpush.bf16.msra.mxu0 %v393
  %570 = vmatmul.bf16.gmra.mxu0 %v188
  %v571 = vpop.f32.mrf.mxu0
  %v572 = vadd.f32 %v529, %v571
  %v573 = vpop.f32.mrf.mxu0
  %v574 = vadd.f32 %v531, %v573
  %575 = vmatmul.bf16.gmra.mxu0 %v192
  %v576 = vpop.f32.mrf.mxu0
  %v577 = vadd.f32 %v534, %v576
  %v578 = vpop.f32.mrf.mxu0
  %v579 = vadd.f32 %v536, %v578
  %580 = vmatmul.bf16.gmra.mxu0 %v196
  %v581 = vpop.f32.mrf.mxu0
  %v582 = vadd.f32 %v539, %v581
  %v583 = vpop.f32.mrf.mxu0
  %v584 = vadd.f32 %v541, %v583
  %585 = vmatmul.bf16.gmra.mxu0 %v200
  %v586 = vpop.f32.mrf.mxu0
  %v587 = vadd.f32 %v544, %v586
  %v588 = vpop.f32.mrf.mxu0
  %v589 = vadd.f32 %v546, %v588
  %590 = vmatmul.bf16.gmra.mxu0 %v204
  %v591 = vpop.f32.mrf.mxu0
  %v592 = vadd.f32 %v549, %v591
  %v593 = vpop.f32.mrf.mxu0
  %v594 = vadd.f32 %v551, %v593
  %595 = vmatmul.bf16.gmra.mxu0 %v208
  %v596 = vpop.f32.mrf.mxu0
  %v597 = vadd.f32 %v554, %v596
  %v598 = vpop.f32.mrf.mxu0
  %v599 = vadd.f32 %v556, %v598
  %600 = vmatmul.bf16.gmra.mxu0 %v212
  %v601 = vpop.f32.mrf.mxu0
  %v602 = vadd.f32 %v559, %v601
  %v603 = vpop.f32.mrf.mxu0
  %604 = vdwg.mxu0
  %v605 = vadd.f32 %v572, %v574
  %v606 = vadd.f32 %v605, %v577
  %v607 = vadd.f32 %v606, %v579
  %v608 = vadd.f32 %v607, %v582
  %v609 = vadd.f32 %v608, %v584
  %v610 = vadd.f32 %v609, %v587
  %v611 = vadd.f32 %v610, %v589
  %v612 = vadd.f32 %v611, %v592
  %v613 = vadd.f32 %v612, %v594
  %v614 = vadd.f32 %v613, %v597
  %v615 = vadd.f32 %v614, %v599
  %vm616 = vcmask 1041408
  %v617 = vsel %vm616, %v602, 0.0
  %v618 = vadd.f32 %v615, %v617
  %v619 = vrot.slane %v618, 4
  %v620 = vadd.f32 %v618, %v619
  %v621 = vrot.slane %v620, 2
  %v622 = vadd.f32 %v620, %v621
  %v623 = vrot.slane %v622, 1
  %v624 = vadd.f32 %v622, %v623
  %v625 = vmul.f32 %v624, 0.010204081
  %v626 = vsub.f32 %v572, %v625
  %v627 = vsub.f32 %v574, %v625
  %v628 = vsub.f32 %v577, %v625
  %v629 = vsub.f32 %v579, %v625
  %v630 = vsub.f32 %v582, %v625
  %v631 = vsub.f32 %v584, %v625
  %v632 = vsub.f32 %v587, %v625
  %v633 = vsub.f32 %v589, %v625
  %v634 = vsub.f32 %v592, %v625
  %v635 = vsub.f32 %v594, %v625
  %v636 = vsub.f32 %v597, %v625
  %v637 = vsub.f32 %v599, %v625
  %v638 = vsub.f32 %v602, %v625
  %v639 = vmul.f32 %v626, %v626
  %v640 = vmul.f32 %v627, %v627
  %v641 = vmul.f32 %v628, %v628
  %v642 = vmul.f32 %v629, %v629
  %v643 = vmul.f32 %v630, %v630
  %v644 = vmul.f32 %v631, %v631
  %v645 = vmul.f32 %v632, %v632
  %v646 = vmul.f32 %v633, %v633
  %v647 = vmul.f32 %v634, %v634
  %v648 = vmul.f32 %v635, %v635
  %v649 = vmul.f32 %v636, %v636
  %v650 = vmul.f32 %v637, %v637
  %v651 = vmul.f32 %v638, %v638
  %v652 = vadd.f32 %v639, %v640
  %v653 = vadd.f32 %v652, %v641
  %v654 = vadd.f32 %v653, %v642
  %v655 = vadd.f32 %v654, %v643
  %v656 = vadd.f32 %v655, %v644
  %v657 = vadd.f32 %v656, %v645
  %v658 = vadd.f32 %v657, %v646
  %v659 = vadd.f32 %v658, %v647
  %v660 = vadd.f32 %v659, %v648
  %v661 = vadd.f32 %v660, %v649
  %v662 = vadd.f32 %v661, %v650
  %v663 = vsel %vm616, %v651, 0.0
  %v664 = vadd.f32 %v662, %v663
  %v665 = vrot.slane %v664, 4
  %v666 = vadd.f32 %v664, %v665
  %v667 = vrot.slane %v666, 2
  %v668 = vadd.f32 %v666, %v667
  %v669 = vrot.slane %v668, 1
  %v670 = vadd.f32 %v668, %v669
  %v671 = vmul.f32 %v670, 0.010204081
  %v672 = vadd.f32 %v671, 1e-05
  %v673 = vrsqrt.pop %v672
  %v674 = vmul.f32 %v673, %v672
  %v675 = vmul.f32 %v674, %v673
  %v676 = vmul.f32 0.5, %v675
  %v677 = vsub.f32 1.5, %v676
  %v678 = vmul.f32 %v673, %v677
  %vm679 = vweird.f32 %v672
  %vm680 = vweird.f32 %v673
  %vm681 = vmor %vm679, %vm680
  %v682 = vsel %vm681, %v673, %v678
  %v683 = vld [vmem:[%s2] sm:$0x1]
  %v684 = vmul.f32 %v682, %v683
  %v685 = vperm.slane %v684, 0
  %v686 = vmul.f32 %v626, %v685
  %v687 = vmul.f32 %v627, %v685
  %v688 = vmul.f32 %v628, %v685
  %v689 = vmul.f32 %v629, %v685
  %v690 = vmul.f32 %v630, %v685
  %v691 = vmul.f32 %v631, %v685
  %v692 = vmul.f32 %v632, %v685
  %v693 = vmul.f32 %v633, %v685
  %v694 = vmul.f32 %v634, %v685
  %v695 = vmul.f32 %v635, %v685
  %v696 = vmul.f32 %v636, %v685
  %v697 = vmul.f32 %v637, %v685
  %v698 = vmul.f32 %v638, %v685
  %v699 = vld [vmem:[%s3] sm:$0x1]
  %v701 = vperm.slane %v699, 0
  %v703 = vadd.f32 %v686, %v701
  %v704 = vadd.f32 %v687, %v701
  %v705 = vadd.f32 %v688, %v701
  %v706 = vadd.f32 %v689, %v701
  %v707 = vadd.f32 %v690, %v701
  %v708 = vadd.f32 %v691, %v701
  %v709 = vadd.f32 %v692, %v701
  %v710 = vadd.f32 %v693, %v701
  %v711 = vadd.f32 %v694, %v701
  %v712 = vadd.f32 %v695, %v701
  %v713 = vadd.f32 %v696, %v701
  %v714 = vadd.f32 %v697, %v701
  %v715 = vadd.f32 %v698, %v701
  %v716 = vmax.f32 %v703, 0.0
  %v717 = vmax.f32 %v704, 0.0
  %v718 = vmax.f32 %v705, 0.0
  %v719 = vmax.f32 %v706, 0.0
  %v720 = vmax.f32 %v707, 0.0
  %v721 = vmax.f32 %v708, 0.0
  %v722 = vmax.f32 %v709, 0.0
  %v723 = vmax.f32 %v710, 0.0
  %v724 = vmax.f32 %v711, 0.0
  %v725 = vmax.f32 %v712, 0.0
  %v726 = vmax.f32 %v713, 0.0
  %v727 = vmax.f32 %v714, 0.0
  %v728 = vmax.f32 %v715, 0.0
  %v729 = vpack.c.bf16 %v716, %v716
  %v730 = vpack.c.bf16 %v717, %v717
  %v731 = vpack.c.bf16 %v718, %v718
  %v732 = vpack.c.bf16 %v719, %v719
  %v733 = vpack.c.bf16 %v720, %v720
  %v734 = vpack.c.bf16 %v721, %v721
  %v735 = vpack.c.bf16 %v722, %v722
  %v736 = vpack.c.bf16 %v723, %v723
  %v737 = vpack.c.bf16 %v724, %v724
  %v738 = vpack.c.bf16 %v725, %v725
  %v739 = vpack.c.bf16 %v726, %v726
  %v740 = vpack.c.bf16 %v727, %v727
  %v741 = vpack.c.bf16 %v728, %v728
  %vm742 = vcmask 257024
  %743 = vst.msk [vmem:[%s4] sm:$0xf] %vm742, %v729
  %744 = vst.msk [vmem:[%s4 + $0x4] sm:$0xf] %vm742, %v730
  %745 = vst.msk [vmem:[%s4 + $0x8] sm:$0xf] %vm742, %v731
  %746 = vst.msk [vmem:[%s4 + $0xc] sm:$0xf] %vm742, %v732
  %747 = vst.msk [vmem:[%s4 + $0x10] sm:$0xf] %vm742, %v733
  %748 = vst.msk [vmem:[%s4 + $0x14] sm:$0xf] %vm742, %v734
  %749 = vst.msk [vmem:[%s4 + $0x18] sm:$0xf] %vm742, %v735
  %750 = vst.msk [vmem:[%s4 + $0x1c] sm:$0xf] %vm742, %v736
  %751 = vst.msk [vmem:[%s4 + $0x20] sm:$0xf] %vm742, %v737
  %752 = vst.msk [vmem:[%s4 + $0x24] sm:$0xf] %vm742, %v738
  %753 = vst.msk [vmem:[%s4 + $0x28] sm:$0xf] %vm742, %v739
  %754 = vst.msk [vmem:[%s4 + $0x2c] sm:$0xf] %vm742, %v740
  %vm755 = vcmask 253952
  %756 = vst.msk [vmem:[%s4 + $0x30] sm:$0x1] %vm755, %v741
  // Predicated region
  $region18: #{dqn_forward.4} parent=0 // pred_check
    _
  $region19: #{dqn_forward.4} parent=0 // pred_check_branch
    %758 = sbr.rel (0) target = $region21
  $region20: #{dqn_forward.4} parent=0 // pred_region
    _
  $region21: #{dqn_forward.4} parent=0 // pred_fallthru
    _
  // Predicated region
  $region22: #{dqn_forward.4} parent=0 // pred_check
    _
  $region23: #{dqn_forward.4} parent=0 // pred_check_branch
    %760 = sbr.rel (0) target = $region25
  $region24: #{dqn_forward.4} parent=0 // pred_region
    _
  $region25: #{dqn_forward.4} parent=0 // pred_fallthru
    _

// kernel: dqn_forward.5
$region0: #{dqn_forward.5}
  #allocation0 [shape = 'u32[]', space=smem, size = 0x4, offset = 0x4, fixed_abs, tag = 'smem constant byte address 0x4 - core index']
  #allocation1 [shape = 'u32[72,128]{1,0:T(1,128)}', space=vmem, size = 0x9000, scoped, tag = 'internal scratch']
  %s0 = inlined_call_operand.vmem [shape: bf16[8,1024], index: 0, kind: input, shape index: {}]
  %s1 = inlined_call_operand.vmem [shape: bf16[1024,128], index: 1, kind: input, shape index: {}]
  %s2 = inlined_call_operand.vmem [shape: f32[1,128], index: 2, kind: input, shape index: {}]
  %s3 = inlined_call_operand.vmem [shape: f32[1,128], index: 3, kind: input, shape index: {}]
  %s4 = inlined_call_operand.vmem [shape: bf16[4,128,128], index: 4, kind: input, shape index: {}]
  %s5 = inlined_call_operand.vmem [shape: f32[1,128], index: 5, kind: input, shape index: {}]
  %s6 = inlined_call_operand.hbm [shape: f32[2,128], index: 6, kind: output, shape index: {}]
  %s7 = sld [smem:[#allocation0]]
  $region34: #{dqn_forward.5} parent=0
    _
  %s9 = ssub.s32 1, %s7
  %s10 = scalar_select 0, %s9, %s7
  $region1: #{dqn_forward.5} parent=0
    #allocation2 [shape = 'u8[1024]{0}', space=vmem, size = 0x400, scoped, tag = 'output window, operand 0, single buffered']
    #allocation3 [shape = 's32[1]{0}', space=sflag, size = 0x4, scoped, tag = 'scoped memory for dqn_forward.5']
    %11 = vsyncpa [#allocation3], 0
    // Predicated region
    $region2: #{dqn_forward.5} parent=1 // pred_check
      _
    $region3: #{dqn_forward.5} parent=1 // pred_check_branch
      %13 = sbr.rel (0) target = $region5
    $region4: #{dqn_forward.5} parent=1 // pred_region
      _
    $region5: #{dqn_forward.5} parent=1 // pred_fallthru
      _
    // Predicated region
    $region6: #{dqn_forward.5} parent=1 // pred_check
      _
    $region7: #{dqn_forward.5} parent=1 // pred_check_branch
      %15 = sbr.rel (0) target = $region9
    $region8: #{dqn_forward.5} parent=1 // pred_region
      _
    $region9: #{dqn_forward.5} parent=1 // pred_fallthru
      _
    // Predicated region
    $region10: #{dqn_forward.5} parent=1 // pred_check
      _
    $region11: #{dqn_forward.5} parent=1 // pred_check_branch
      %17 = sbr.rel (0) target = $region13
    $region12: #{dqn_forward.5} parent=1 // pred_region
      _
    $region13: #{dqn_forward.5} parent=1 // pred_fallthru
      _
    // Predicated region
    $region14: #{dqn_forward.5} parent=1 // pred_check
      _
    $region15: #{dqn_forward.5} parent=1 // pred_check_branch
      %19 = sbr.rel (0) target = $region17
    $region16: #{dqn_forward.5} parent=1 // pred_region
      _
    $region17: #{dqn_forward.5} parent=1 // pred_fallthru
      _
    // Predicated region
    $region18: #{dqn_forward.5} parent=1 // pred_check
      _
    $region19: #{dqn_forward.5} parent=1 // pred_check_branch
      %21 = sbr.rel (0) target = $region21
    $region20: #{dqn_forward.5} parent=1 // pred_region
      _
    $region21: #{dqn_forward.5} parent=1 // pred_fallthru
      _
    // Predicated region
    $region22: #{dqn_forward.5} parent=1 // pred_check
      _
    $region23: #{dqn_forward.5} parent=1 // pred_check_branch
      %23 = sbr.rel (0) target = $region25
    $region24: #{dqn_forward.5} parent=1 // pred_region
      _
    $region25: #{dqn_forward.5} parent=1 // pred_fallthru
      _
    %v24 = vld [vmem:[%s0] sm:$0xff]
    %v25 = vld [vmem:[%s0 + $0x8] sm:$0xff]
    %v26 = vld [vmem:[%s0 + $0x10] sm:$0xff]
    %v27 = vld [vmem:[%s0 + $0x18] sm:$0xff]
    %v28 = vld [vmem:[%s1] sm:$0xf]
    %v29 = vld [vmem:[%s1 + $0x4] sm:$0xf]
    %v30 = vld [vmem:[%s1 + $0x8] sm:$0xf]
    %v31 = vld [vmem:[%s1 + $0xc] sm:$0xf]
    %v32 = vld [vmem:[%s1 + $0x10] sm:$0xf]
    %v33 = vld [vmem:[%s1 + $0x14] sm:$0xf]
    %v34 = vld [vmem:[%s1 + $0x18] sm:$0xf]
    %v35 = vld [vmem:[%s1 + $0x1c] sm:$0xf]
    %v36 = vld [vmem:[%s1 + $0x20] sm:$0xf]
    %v37 = vld [vmem:[%s1 + $0x24] sm:$0xf]
    %v38 = vld [vmem:[%s1 + $0x28] sm:$0xf]
    %v39 = vld [vmem:[%s1 + $0x2c] sm:$0xf]
    %v40 = vld [vmem:[%s1 + $0x30] sm:$0xf]
    %v41 = vld [vmem:[%s1 + $0x34] sm:$0xf]
    %v42 = vld [vmem:[%s1 + $0x38] sm:$0xf]
    %v43 = vld [vmem:[%s1 + $0x3c] sm:$0xf]
    %v44 = vld [vmem:[%s1 + $0x40] sm:$0xf]
    %v45 = vld [vmem:[%s1 + $0x44] sm:$0xf]
    %v46 = vld [vmem:[%s1 + $0x48] sm:$0xf]
    %v47 = vld [vmem:[%s1 + $0x4c] sm:$0xf]
    %v48 = vld [vmem:[%s1 + $0x50] sm:$0xf]
    %v49 = vld [vmem:[%s1 + $0x54] sm:$0xf]
    %v50 = vld [vmem:[%s1 + $0x58] sm:$0xf]
    %v51 = vld [vmem:[%s1 + $0x5c] sm:$0xf]
    %v52 = vld [vmem:[%s1 + $0x60] sm:$0xf]
    %v53 = vld [vmem:[%s1 + $0x64] sm:$0xf]
    %v54 = vld [vmem:[%s1 + $0x68] sm:$0xf]
    %v55 = vld [vmem:[%s1 + $0x6c] sm:$0xf]
    %v56 = vld [vmem:[%s1 + $0x70] sm:$0xf]
    %v57 = vld [vmem:[%s1 + $0x74] sm:$0xf]
    %v58 = vld [vmem:[%s1 + $0x78] sm:$0xf]
    %v59 = vld [vmem:[%s1 + $0x7c] sm:$0xf]
    %v60 = vld [vmem:[%s1 + $0x80] sm:$0xf]
    %v61 = vld [vmem:[%s1 + $0x84] sm:$0xf]
    %v62 = vld [vmem:[%s1 + $0x88] sm:$0xf]
    %v63 = vld [vmem:[%s1 + $0x8c] sm:$0xf]
    %v64 = vld [vmem:[%s1 + $0x90] sm:$0xf]
    %v65 = vld [vmem:[%s1 + $0x94] sm:$0xf]
    %v66 = vld [vmem:[%s1 + $0x98] sm:$0xf]
    %v67 = vld [vmem:[%s1 + $0x9c] sm:$0xf]
    %v68 = vld [vmem:[%s1 + $0xa0] sm:$0xf]
    %v69 = vld [vmem:[%s1 + $0xa4] sm:$0xf]
    %v70 = vld [vmem:[%s1 + $0xa8] sm:$0xf]
    %v71 = vld [vmem:[%s1 + $0xac] sm:$0xf]
    %v72 = vld [vmem:[%s1 + $0xb0] sm:$0xf]
    %v73 = vld [vmem:[%s1 + $0xb4] sm:$0xf]
    %v74 = vld [vmem:[%s1 + $0xb8] sm:$0xf]
    %v75 = vld [vmem:[%s1 + $0xbc] sm:$0xf]
    %v76 = vld [vmem:[%s1 + $0xc0] sm:$0xf]
    %v77 = vld [vmem:[%s1 + $0xc4] sm:$0xf]
    %v78 = vld [vmem:[%s1 + $0xc8] sm:$0xf]
    %v79 = vld [vmem:[%s1 + $0xcc] sm:$0xf]
    %v80 = vld [vmem:[%s1 + $0xd0] sm:$0xf]
    %v81 = vld [vmem:[%s1 + $0xd4] sm:$0xf]
    %v82 = vld [vmem:[%s1 + $0xd8] sm:$0xf]
    %v83 = vld [vmem:[%s1 + $0xdc] sm:$0xf]
    %v84 = vld [vmem:[%s1 + $0xe0] sm:$0xf]
    %v85 = vld [vmem:[%s1 + $0xe4] sm:$0xf]
    %v86 = vld [vmem:[%s1 + $0xe8] sm:$0xf]
    %v87 = vld [vmem:[%s1 + $0xec] sm:$0xf]
    %v88 = vld [vmem:[%s1 + $0xf0] sm:$0xf]
    %v89 = vld [vmem:[%s1 + $0xf4] sm:$0xf]
    %v90 = vld [vmem:[%s1 + $0xf8] sm:$0xf]
    %v91 = vld [vmem:[%s1 + $0xfc] sm:$0xf]
    %v92 = vld [vmem:[%s1 + $0x100] sm:$0xf]
    %v93 = vld [vmem:[%s1 + $0x104] sm:$0xf]
    %v94 = vld [vmem:[%s1 + $0x108] sm:$0xf]
    %v95 = vld [vmem:[%s1 + $0x10c] sm:$0xf]
    %v96 = vld [vmem:[%s1 + $0x110] sm:$0xf]
    %v97 = vld [vmem:[%s1 + $0x114] sm:$0xf]
    %v98 = vld [vmem:[%s1 + $0x118] sm:$0xf]
    %v99 = vld [vmem:[%s1 + $0x11c] sm:$0xf]
    %v100 = vld [vmem:[%s1 + $0x120] sm:$0xf]
    %v101 = vld [vmem:[%s1 + $0x124] sm:$0xf]
    %v102 = vld [vmem:[%s1 + $0x128] sm:$0xf]
    %v103 = vld [vmem:[%s1 + $0x12c] sm:$0xf]
    %v104 = vld [vmem:[%s1 + $0x130] sm:$0xf]
    %v105 = vld [vmem:[%s1 + $0x134] sm:$0xf]
    %v106 = vld [vmem:[%s1 + $0x138] sm:$0xf]
    %v107 = vld [vmem:[%s1 + $0x13c] sm:$0xf]
    %v108 = vld [vmem:[%s1 + $0x140] sm:$0xf]
    %v109 = vld [vmem:[%s1 + $0x144] sm:$0xf]
    %v110 = vld [vmem:[%s1 + $0x148] sm:$0xf]
    %v111 = vld [vmem:[%s1 + $0x14c] sm:$0xf]
    %v112 = vld [vmem:[%s1 + $0x150] sm:$0xf]
    %v113 = vld [vmem:[%s1 + $0x154] sm:$0xf]
    %v114 = vld [vmem:[%s1 + $0x158] sm:$0xf]
    %v115 = vld [vmem:[%s1 + $0x15c] sm:$0xf]
    %v116 = vld [vmem:[%s1 + $0x160] sm:$0xf]
    %v117 = vld [vmem:[%s1 + $0x164] sm:$0xf]
    %v118 = vld [vmem:[%s1 + $0x168] sm:$0xf]
    %v119 = vld [vmem:[%s1 + $0x16c] sm:$0xf]
    %v120 = vld [vmem:[%s1 + $0x170] sm:$0xf]
    %v121 = vld [vmem:[%s1 + $0x174] sm:$0xf]
    %v122 = vld [vmem:[%s1 + $0x178] sm:$0xf]
    %v123 = vld [vmem:[%s1 + $0x17c] sm:$0xf]
    %v124 = vld [vmem:[%s1 + $0x180] sm:$0xf]
    %v125 = vld [vmem:[%s1 + $0x184] sm:$0xf]
    %v126 = vld [vmem:[%s1 + $0x188] sm:$0xf]
    %v127 = vld [vmem:[%s1 + $0x18c] sm:$0xf]
    %v128 = vld [vmem:[%s1 + $0x190] sm:$0xf]
    %v129 = vld [vmem:[%s1 + $0x194] sm:$0xf]
    %v130 = vld [vmem:[%s1 + $0x198] sm:$0xf]
    %v131 = vld [vmem:[%s1 + $0x19c] sm:$0xf]
    %v132 = vld [vmem:[%s1 + $0x1a0] sm:$0xf]
    %v133 = vld [vmem:[%s1 + $0x1a4] sm:$0xf]
    %v134 = vld [vmem:[%s1 + $0x1a8] sm:$0xf]
    %v135 = vld [vmem:[%s1 + $0x1ac] sm:$0xf]
    %v136 = vld [vmem:[%s1 + $0x1b0] sm:$0xf]
    %v137 = vld [vmem:[%s1 + $0x1b4] sm:$0xf]
    %v138 = vld [vmem:[%s1 + $0x1b8] sm:$0xf]
    %v139 = vld [vmem:[%s1 + $0x1bc] sm:$0xf]
    %v140 = vld [vmem:[%s1 + $0x1c0] sm:$0xf]
    %v141 = vld [vmem:[%s1 + $0x1c4] sm:$0xf]
    %v142 = vld [vmem:[%s1 + $0x1c8] sm:$0xf]
    %v143 = vld [vmem:[%s1 + $0x1cc] sm:$0xf]
    %v144 = vld [vmem:[%s1 + $0x1d0] sm:$0xf]
    %v145 = vld [vmem:[%s1 + $0x1d4] sm:$0xf]
    %v146 = vld [vmem:[%s1 + $0x1d8] sm:$0xf]
    %v147 = vld [vmem:[%s1 + $0x1dc] sm:$0xf]
    %v148 = vld [vmem:[%s1 + $0x1e0] sm:$0xf]
    %v149 = vld [vmem:[%s1 + $0x1e4] sm:$0xf]
    %v150 = vld [vmem:[%s1 + $0x1e8] sm:$0xf]
    %v151 = vld [vmem:[%s1 + $0x1ec] sm:$0xf]
    %v152 = vld [vmem:[%s1 + $0x1f0] sm:$0xf]
    %v153 = vld [vmem:[%s1 + $0x1f4] sm:$0xf]
    %v154 = vld [vmem:[%s1 + $0x1f8] sm:$0xf]
    %v155 = vld [vmem:[%s1 + $0x1fc] sm:$0xf]
    %v160 = vunpack.c.l.b16 %v24
    %v161 = vunpack.c.h.b16 %v24
    %v162 = vunpack.c.l.b16 %v25
    %v163 = vunpack.c.h.b16 %v25
    %v164 = vunpack.c.l.b16 %v26
    %v165 = vunpack.c.h.b16 %v26
    %v166 = vunpack.c.l.b16 %v27
    %v167 = vunpack.c.h.b16 %v27
    %v168 = vpack.c.b16 %v160, %v160
    %v169 = vpack.c.b16 %v161, %v161
    %v170 = vpack.c.b16 %v162, %v162
    %v171 = vpack.c.b16 %v163, %v163
    %v172 = vpack.c.b16 %v164, %v164
    %v173 = vpack.c.b16 %v165, %v165
    %v174 = vpack.c.b16 %v166, %v166
    %v175 = vpack.c.b16 %v167, %v167
    %v312 = vunpack.c.l.b16 %v28
    %v313 = vunpack.c.l.b16 %v29
    %v314 = vunpack.c.l.b16 %v30
    %v315 = vunpack.c.l.b16 %v31
    %v316 = vunpack.c.l.b16 %v32
    %v317 = vunpack.c.l.b16 %v33
    %v318 = vunpack.c.l.b16 %v34
    %v319 = vunpack.c.l.b16 %v35
    %v320 = vunpack.c.l.b16 %v36
    %v321 = vunpack.c.l.b16 %v37
    %v322 = vunpack.c.l.b16 %v38
    %v323 = vunpack.c.l.b16 %v39
    %v324 = vunpack.c.l.b16 %v40
    %v325 = vunpack.c.l.b16 %v41
    %v326 = vunpack.c.l.b16 %v42
    %v327 = vunpack.c.l.b16 %v43
    %v328 = vunpack.c.l.b16 %v44
    %v329 = vunpack.c.l.b16 %v45
    %v330 = vunpack.c.l.b16 %v46
    %v331 = vunpack.c.l.b16 %v47
    %v332 = vunpack.c.l.b16 %v48
    %v333 = vunpack.c.l.b16 %v49
    %v334 = vunpack.c.l.b16 %v50
    %v335 = vunpack.c.l.b16 %v51
    %v336 = vunpack.c.l.b16 %v52
    %v337 = vunpack.c.l.b16 %v53
    %v338 = vunpack.c.l.b16 %v54
    %v339 = vunpack.c.l.b16 %v55
    %v340 = vunpack.c.l.b16 %v56
    %v341 = vunpack.c.l.b16 %v57
    %v342 = vunpack.c.l.b16 %v58
    %v343 = vunpack.c.l.b16 %v59
    %v344 = vunpack.c.l.b16 %v60
    %v345 = vunpack.c.l.b16 %v61
    %v346 = vunpack.c.l.b16 %v62
    %v347 = vunpack.c.l.b16 %v63
    %v348 = vunpack.c.l.b16 %v64
    %v349 = vunpack.c.l.b16 %v65
    %v350 = vunpack.c.l.b16 %v66
    %v351 = vunpack.c.l.b16 %v67
    %v352 = vunpack.c.l.b16 %v68
    %v353 = vunpack.c.l.b16 %v69
    %v354 = vunpack.c.l.b16 %v70
    %v355 = vunpack.c.l.b16 %v71
    %v356 = vunpack.c.l.b16 %v72
    %v357 = vunpack.c.l.b16 %v73
    %v358 = vunpack.c.l.b16 %v74
    %v359 = vunpack.c.l.b16 %v75
    %v360 = vunpack.c.l.b16 %v76
    %v361 = vunpack.c.l.b16 %v77
    %v362 = vunpack.c.l.b16 %v78
    %v363 = vunpack.c.l.b16 %v79
    %v364 = vunpack.c.l.b16 %v80
    %v365 = vunpack.c.l.b16 %v81
    %v366 = vunpack.c.l.b16 %v82
    %v367 = vunpack.c.l.b16 %v83
    %v368 = vunpack.c.l.b16 %v84
    %v369 = vunpack.c.l.b16 %v85
    %v370 = vunpack.c.l.b16 %v86
    %v371 = vunpack.c.l.b16 %v87
    %v372 = vunpack.c.l.b16 %v88
    %v373 = vunpack.c.l.b16 %v89
    %v374 = vunpack.c.l.b16 %v90
    %v375 = vunpack.c.l.b16 %v91
    %v376 = vunpack.c.l.b16 %v92
    %v377 = vunpack.c.l.b16 %v93
    %v378 = vunpack.c.l.b16 %v94
    %v379 = vunpack.c.l.b16 %v95
    %v380 = vunpack.c.l.b16 %v96
    %v381 = vunpack.c.l.b16 %v97
    %v382 = vunpack.c.l.b16 %v98
    %v383 = vunpack.c.l.b16 %v99
    %v384 = vunpack.c.l.b16 %v100
    %v385 = vunpack.c.l.b16 %v101
    %v386 = vunpack.c.l.b16 %v102
    %v387 = vunpack.c.l.b16 %v103
    %v388 = vunpack.c.l.b16 %v104
    %v389 = vunpack.c.l.b16 %v105
    %v390 = vunpack.c.l.b16 %v106
    %v391 = vunpack.c.l.b16 %v107
    %v392 = vunpack.c.l.b16 %v108
    %v393 = vunpack.c.l.b16 %v109
    %v394 = vunpack.c.l.b16 %v110
    %v395 = vunpack.c.l.b16 %v111
    %v396 = vunpack.c.l.b16 %v112
    %v397 = vunpack.c.l.b16 %v113
    %v398 = vunpack.c.l.b16 %v114
    %v399 = vunpack.c.l.b16 %v115
    %v400 = vunpack.c.l.b16 %v116
    %v401 = vunpack.c.l.b16 %v117
    %v402 = vunpack.c.l.b16 %v118
    %v403 = vunpack.c.l.b16 %v119
    %v404 = vunpack.c.l.b16 %v120
    %v405 = vunpack.c.l.b16 %v121
    %v406 = vunpack.c.l.b16 %v122
    %v407 = vunpack.c.l.b16 %v123
    %v408 = vunpack.c.l.b16 %v124
    %v409 = vunpack.c.l.b16 %v125
    %v410 = vunpack.c.l.b16 %v126
    %v411 = vunpack.c.l.b16 %v127
    %v412 = vunpack.c.l.b16 %v128
    %v413 = vunpack.c.l.b16 %v129
    %v414 = vunpack.c.l.b16 %v130
    %v415 = vunpack.c.l.b16 %v131
    %v416 = vunpack.c.l.b16 %v132
    %v417 = vunpack.c.l.b16 %v133
    %v418 = vunpack.c.l.b16 %v134
    %v419 = vunpack.c.l.b16 %v135
    %v420 = vunpack.c.l.b16 %v136
    %v421 = vunpack.c.l.b16 %v137
    %v422 = vunpack.c.l.b16 %v138
    %v423 = vunpack.c.l.b16 %v139
    %v424 = vunpack.c.l.b16 %v140
    %v425 = vunpack.c.l.b16 %v141
    %v426 = vunpack.c.l.b16 %v142
    %v427 = vunpack.c.l.b16 %v143
    %v428 = vunpack.c.l.b16 %v144
    %v429 = vunpack.c.l.b16 %v145
    %v430 = vunpack.c.l.b16 %v146
    %v431 = vunpack.c.l.b16 %v147
    %v432 = vunpack.c.l.b16 %v148
    %v433 = vunpack.c.l.b16 %v149
    %v434 = vunpack.c.l.b16 %v150
    %v435 = vunpack.c.l.b16 %v151
    %v436 = vunpack.c.l.b16 %v152
    %v437 = vunpack.c.l.b16 %v153
    %v438 = vunpack.c.l.b16 %v154
    %v439 = vunpack.c.l.b16 %v155
    %v440 = vpack.c.b16 %v313, %v312
    %v441 = vpack.c.b16 %v315, %v314
    %v442 = vpack.c.b16 %v317, %v316
    %v443 = vpack.c.b16 %v319, %v318
    %v444 = vpack.c.b16 %v321, %v320
    %v445 = vpack.c.b16 %v323, %v322
    %v446 = vpack.c.b16 %v325, %v324
    %v447 = vpack.c.b16 %v327, %v326
    %v448 = vpack.c.b16 %v329, %v328
    %v449 = vpack.c.b16 %v331, %v330
    %v450 = vpack.c.b16 %v333, %v332
    %v451 = vpack.c.b16 %v335, %v334
    %v452 = vpack.c.b16 %v337, %v336
    %v453 = vpack.c.b16 %v339, %v338
    %v454 = vpack.c.b16 %v341, %v340
    %v455 = vpack.c.b16 %v343, %v342
    %v456 = vpack.c.b16 %v345, %v344
    %v457 = vpack.c.b16 %v347, %v346
    %v458 = vpack.c.b16 %v349, %v348
    %v459 = vpack.c.b16 %v351, %v350
    %v460 = vpack.c.b16 %v353, %v352
    %v461 = vpack.c.b16 %v355, %v354
    %v462 = vpack.c.b16 %v357, %v356
    %v463 = vpack.c.b16 %v359, %v358
    %v464 = vpack.c.b16 %v361, %v360
    %v465 = vpack.c.b16 %v363, %v362
    %v466 = vpack.c.b16 %v365, %v364
    %v467 = vpack.c.b16 %v367, %v366
    %v468 = vpack.c.b16 %v369, %v368
    %v469 = vpack.c.b16 %v371, %v370
    %v470 = vpack.c.b16 %v373, %v372
    %v471 = vpack.c.b16 %v375, %v374
    %v472 = vpack.c.b16 %v377, %v376
    %v473 = vpack.c.b16 %v379, %v378
    %v474 = vpack.c.b16 %v381, %v380
    %v475 = vpack.c.b16 %v383, %v382
    %v476 = vpack.c.b16 %v385, %v384
    %v477 = vpack.c.b16 %v387, %v386
    %v478 = vpack.c.b16 %v389, %v388
    %v479 = vpack.c.b16 %v391, %v390
    %v480 = vpack.c.b16 %v393, %v392
    %v481 = vpack.c.b16 %v395, %v394
    %v482 = vpack.c.b16 %v397, %v396
    %v483 = vpack.c.b16 %v399, %v398
    %v484 = vpack.c.b16 %v401, %v400
    %v485 = vpack.c.b16 %v403, %v402
    %v486 = vpack.c.b16 %v405, %v404
    %v487 = vpack.c.b16 %v407, %v406
    %v488 = vpack.c.b16 %v409, %v408
    %v489 = vpack.c.b16 %v411, %v410
    %v490 = vpack.c.b16 %v413, %v412
    %v491 = vpack.c.b16 %v415, %v414
    %v492 = vpack.c.b16 %v417, %v416
    %v493 = vpack.c.b16 %v419, %v418
    %v494 = vpack.c.b16 %v421, %v420
    %v495 = vpack.c.b16 %v423, %v422
    %v496 = vpack.c.b16 %v425, %v424
    %v497 = vpack.c.b16 %v427, %v426
    %v498 = vpack.c.b16 %v429, %v428
    %v499 = vpack.c.b16 %v431, %v430
    %v500 = vpack.c.b16 %v433, %v432
    %v501 = vpack.c.b16 %v435, %v434
    %v502 = vpack.c.b16 %v437, %v436
    %v503 = vpack.c.b16 %v439, %v438
    %568 = vmatpush.bf16.msra.mxu0 %v447
    %569 = vmatpush.bf16.msra.mxu0 %v446
    %570 = vmatpush.bf16.msra.mxu0 %v445
    %571 = vmatpush.bf16.msra.mxu0 %v444
    %572 = vmatpush.bf16.msra.mxu0 %v443
    %573 = vmatpush.bf16.msra.mxu0 %v442
    %574 = vmatpush.bf16.msra.mxu0 %v441
    %575 = vmatpush.bf16.msra.mxu0 %v440
    %576 = vmatmul.bf16.gmra.mxu0 %v168
    %v577 = vpop.f32.mrf.mxu0
    %v578 = vadd.f32 0.0, %v577
    %v579 = vpop.f32.mrf.mxu0
    %580 = vdwg.mxu0
    %581 = vmatpush.bf16.msra.mxu0 %v455
    %582 = vmatpush.bf16.msra.mxu0 %v454
    %583 = vmatpush.bf16.msra.mxu0 %v453
    %584 = vmatpush.bf16.msra.mxu0 %v452
    %585 = vmatpush.bf16.msra.mxu0 %v451
    %586 = vmatpush.bf16.msra.mxu0 %v450
    %587 = vmatpush.bf16.msra.mxu0 %v449
    %588 = vmatpush.bf16.msra.mxu0 %v448
    %589 = vmatmul.bf16.gmra.mxu0 %v169
    %v590 = vpop.f32.mrf.mxu0
    %v591 = vadd.f32 %v578, %v590
    %v592 = vpop.f32.mrf.mxu0
    %593 = vdwg.mxu0
    %594 = vmatpush.bf16.msra.mxu0 %v463
    %595 = vmatpush.bf16.msra.mxu0 %v462
    %596 = vmatpush.bf16.msra.mxu0 %v461
    %597 = vmatpush.bf16.msra.mxu0 %v460
    %598 = vmatpush.bf16.msra.mxu0 %v459
    %599 = vmatpush.bf16.msra.mxu0 %v458
    %600 = vmatpush.bf16.msra.mxu0 %v457
    %601 = vmatpush.bf16.msra.mxu0 %v456
    %602 = vmatmul.bf16.gmra.mxu0 %v170
    %v603 = vpop.f32.mrf.mxu0
    %v604 = vadd.f32 %v591, %v603
    %v605 = vpop.f32.mrf.mxu0
    %606 = vdwg.mxu0
    %607 = vmatpush.bf16.msra.mxu0 %v471
    %608 = vmatpush.bf16.msra.mxu0 %v470
    %609 = vmatpush.bf16.msra.mxu0 %v469
    %610 = vmatpush.bf16.msra.mxu0 %v468
    %611 = vmatpush.bf16.msra.mxu0 %v467
    %612 = vmatpush.bf16.msra.mxu0 %v466
    %613 = vmatpush.bf16.msra.mxu0 %v465
    %614 = vmatpush.bf16.msra.mxu0 %v464
    %615 = vmatmul.bf16.gmra.mxu0 %v171
    %v616 = vpop.f32.mrf.mxu0
    %v617 = vadd.f32 %v604, %v616
    %v618 = vpop.f32.mrf.mxu0
    %619 = vdwg.mxu0
    %620 = vmatpush.bf16.msra.mxu0 %v479
    %621 = vmatpush.bf16.msra.mxu0 %v478
    %622 = vmatpush.bf16.msra.mxu0 %v477
    %623 = vmatpush.bf16.msra.mxu0 %v476
    %624 = vmatpush.bf16.msra.mxu0 %v475
    %625 = vmatpush.bf16.msra.mxu0 %v474
    %626 = vmatpush.bf16.msra.mxu0 %v473
    %627 = vmatpush.bf16.msra.mxu0 %v472
    %628 = vmatmul.bf16.gmra.mxu0 %v172
    %v629 = vpop.f32.mrf.mxu0
    %v630 = vadd.f32 %v617, %v629
    %v631 = vpop.f32.mrf.mxu0
    %632 = vdwg.mxu0
    %633 = vmatpush.bf16.msra.mxu0 %v487
    %634 = vmatpush.bf16.msra.mxu0 %v486
    %635 = vmatpush.bf16.msra.mxu0 %v485
    %636 = vmatpush.bf16.msra.mxu0 %v484
    %637 = vmatpush.bf16.msra.mxu0 %v483
    %638 = vmatpush.bf16.msra.mxu0 %v482
    %639 = vmatpush.bf16.msra.mxu0 %v481
    %640 = vmatpush.bf16.msra.mxu0 %v480
    %641 = vmatmul.bf16.gmra.mxu0 %v173
    %v642 = vpop.f32.mrf.mxu0
    %v643 = vadd.f32 %v630, %v642
    %v644 = vpop.f32.mrf.mxu0
    %645 = vdwg.mxu0
    %646 = vmatpush.bf16.msra.mxu0 %v495
    %647 = vmatpush.bf16.msra.mxu0 %v494
    %648 = vmatpush.bf16.msra.mxu0 %v493
    %649 = vmatpush.bf16.msra.mxu0 %v492
    %650 = vmatpush.bf16.msra.mxu0 %v491
    %651 = vmatpush.bf16.msra.mxu0 %v490
    %652 = vmatpush.bf16.msra.mxu0 %v489
    %653 = vmatpush.bf16.msra.mxu0 %v488
    %654 = vmatmul.bf16.gmra.mxu0 %v174
    %v655 = vpop.f32.mrf.mxu0
    %v656 = vadd.f32 %v643, %v655
    %v657 = vpop.f32.mrf.mxu0
    %658 = vdwg.mxu0
    %659 = vmatpush.bf16.msra.mxu0 %v503
    %660 = vmatpush.bf16.msra.mxu0 %v502
    %661 = vmatpush.bf16.msra.mxu0 %v501
    %662 = vmatpush.bf16.msra.mxu0 %v500
    %663 = vmatpush.bf16.msra.mxu0 %v499
    %664 = vmatpush.bf16.msra.mxu0 %v498
    %665 = vmatpush.bf16.msra.mxu0 %v497
    %666 = vmatpush.bf16.msra.mxu0 %v496
    %667 = vmatmul.bf16.gmra.mxu0 %v175
    %v668 = vpop.f32.mrf.mxu0
    %v669 = vadd.f32 %v656, %v668
    %v670 = vpop.f32.mrf.mxu0
    %671 = vdwg.mxu0
    %v672 = vrot.slane %v669, 4
    %v673 = vadd.f32 %v669, %v672
    %v674 = vrot.slane %v673, 2
    %v675 = vadd.f32 %v673, %v674
    %v676 = vrot.slane %v675, 1
    %v677 = vadd.f32 %v675, %v676
    %v678 = vmul.f32 %v677, 0.125
    %v679 = vsub.f32 %v669, %v678
    %v680 = vmul.f32 %v679, %v679
    %v681 = vrot.slane %v680, 4
    %v682 = vadd.f32 %v680, %v681
    %v683 = vrot.slane %v682, 2
    %v684 = vadd.f32 %v682, %v683
    %v685 = vrot.slane %v684, 1
    %v686 = vadd.f32 %v684, %v685
    %v687 = vmul.f32 %v686, 0.125
    %v688 = vadd.f32 %v687, 1e-05
    %v689 = vrsqrt.pop %v688
    %v690 = vmul.f32 %v689, %v688
    %v691 = vmul.f32 %v690, %v689
    %v692 = vmul.f32 0.5, %v691
    %v693 = vsub.f32 1.5, %v692
    %v694 = vmul.f32 %v689, %v693
    %vm695 = vweird.f32 %v688
    %vm696 = vweird.f32 %v689
    %vm697 = vmor %vm695, %vm696
    %v698 = vsel %vm697, %v689, %v694
    %v699 = vld [vmem:[%s2] sm:$0x1]
    %v700 = vmul.f32 %v698, %v699
    %v701 = vperm.slane %v700, 0
    %v702 = vmul.f32 %v679, %v701
    %v703 = vld [vmem:[%s3] sm:$0x1]
    %v705 = vperm.slane %v703, 0
    %v707 = vadd.f32 %v702, %v705
    %v708 = vmax.f32 %v707, 0.0
    %v709 = vpack.c.bf16 %v708, %v708
    %v710 = vld [vmem:[%s4] sm:$0xf]
    %v711 = vld [vmem:[%s4 + $0x4] sm:$0xf]
    %v712 = vld [vmem:[%s4 + $0x8] sm:$0xf]
    %v713 = vld [vmem:[%s4 + $0xc] sm:$0xf]
    %v714 = vld [vmem:[%s4 + $0x10] sm:$0xf]
    %v715 = vld [vmem:[%s4 + $0x14] sm:$0xf]
    %v716 = vld [vmem:[%s4 + $0x18] sm:$0xf]
    %v717 = vld [vmem:[%s4 + $0x1c] sm:$0xf]
    %v718 = vld [vmem:[%s4 + $0x20] sm:$0xf]
    %v719 = vld [vmem:[%s4 + $0x24] sm:$0xf]
    %v720 = vld [vmem:[%s4 + $0x28] sm:$0xf]
    %v721 = vld [vmem:[%s4 + $0x2c] sm:$0xf]
    %v722 = vld [vmem:[%s4 + $0x30] sm:$0xf]
    %v723 = vld [vmem:[%s4 + $0x34] sm:$0xf]
    %v724 = vld [vmem:[%s4 + $0x38] sm:$0xf]
    %v725 = vld [vmem:[%s4 + $0x3c] sm:$0xf]
    %s726 = scalar_lea.vmem %s4, 64
    %v727 = vld [vmem:[%s726] sm:$0xf]
    %v728 = vld [vmem:[%s726 + $0x4] sm:$0xf]
    %v729 = vld [vmem:[%s726 + $0x8] sm:$0xf]
    %v730 = vld [vmem:[%s726 + $0xc] sm:$0xf]
    %v731 = vld [vmem:[%s726 + $0x10] sm:$0xf]
    %v732 = vld [vmem:[%s726 + $0x14] sm:$0xf]
    %v733 = vld [vmem:[%s726 + $0x18] sm:$0xf]
    %v734 = vld [vmem:[%s726 + $0x1c] sm:$0xf]
    %v735 = vld [vmem:[%s726 + $0x20] sm:$0xf]
    %v736 = vld [vmem:[%s726 + $0x24] sm:$0xf]
    %v737 = vld [vmem:[%s726 + $0x28] sm:$0xf]
    %v738 = vld [vmem:[%s726 + $0x2c] sm:$0xf]
    %v739 = vld [vmem:[%s726 + $0x30] sm:$0xf]
    %v740 = vld [vmem:[%s726 + $0x34] sm:$0xf]
    %v741 = vld [vmem:[%s726 + $0x38] sm:$0xf]
    %v742 = vld [vmem:[%s726 + $0x3c] sm:$0xf]
    %v744 = vrot.slane %v709, 1
    %v762 = vunpack.c.l.b16 %v727
    %v763 = vunpack.c.l.b16 %v728
    %v764 = vunpack.c.l.b16 %v729
    %v765 = vunpack.c.l.b16 %v730
    %v766 = vunpack.c.l.b16 %v731
    %v767 = vunpack.c.l.b16 %v732
    %v768 = vunpack.c.l.b16 %v733
    %v769 = vunpack.c.l.b16 %v734
    %v770 = vunpack.c.l.b16 %v735
    %v771 = vunpack.c.l.b16 %v736
    %v772 = vunpack.c.l.b16 %v737
    %v773 = vunpack.c.l.b16 %v738
    %v774 = vunpack.c.l.b16 %v739
    %v775 = vunpack.c.l.b16 %v740
    %v776 = vunpack.c.l.b16 %v741
    %v777 = vunpack.c.l.b16 %v742
    %v778 = vpack.c.b16 %v763, %v762
    %v779 = vpack.c.b16 %v765, %v764
    %v780 = vpack.c.b16 %v767, %v766
    %v781 = vpack.c.b16 %v769, %v768
    %v782 = vpack.c.b16 %v771, %v770
    %v783 = vpack.c.b16 %v773, %v772
    %v784 = vpack.c.b16 %v775, %v774
    %v785 = vpack.c.b16 %v777, %v776
    %794 = vmatpush.bf16.msra.mxu0 %v785
    %795 = vmatpush.bf16.msra.mxu0 %v784
    %796 = vmatpush.bf16.msra.mxu0 %v783
    %797 = vmatpush.bf16.msra.mxu0 %v782
    %798 = vmatpush.bf16.msra.mxu0 %v781
    %799 = vmatpush.bf16.msra.mxu0 %v780
    %800 = vmatpush.bf16.msra.mxu0 %v779
    %801 = vmatpush.bf16.msra.mxu0 %v778
    %802 = vmatmul.bf16.gmra.mxu0 %v744
    %v803 = vpop.f32.mrf.mxu0
    %v804 = vadd.f32 0.0, %v803
    %v805 = vpop.f32.mrf.mxu0
    %806 = vdwg.mxu0
    %v823 = vunpack.c.l.b16 %v710
    %v824 = vunpack.c.l.b16 %v711
    %v825 = vunpack.c.l.b16 %v712
    %v826 = vunpack.c.l.b16 %v713
    %v827 = vunpack.c.l.b16 %v714
    %v828 = vunpack.c.l.b16 %v715
    %v829 = vunpack.c.l.b16 %v716
    %v830 = vunpack.c.l.b16 %v717
    %v831 = vunpack.c.l.b16 %v718
    %v832 = vunpack.c.l.b16 %v719
    %v833 = vunpack.c.l.b16 %v720
    %v834 = vunpack.c.l.b16 %v721
    %v835 = vunpack.c.l.b16 %v722
    %v836 = vunpack.c.l.b16 %v723
    %v837 = vunpack.c.l.b16 %v724
    %v838 = vunpack.c.l.b16 %v725
    %v839 = vpack.c.b16 %v824, %v823
    %v840 = vpack.c.b16 %v826, %v825
    %v841 = vpack.c.b16 %v828, %v827
    %v842 = vpack.c.b16 %v830, %v829
    %v843 = vpack.c.b16 %v832, %v831
    %v844 = vpack.c.b16 %v834, %v833
    %v845 = vpack.c.b16 %v836, %v835
    %v846 = vpack.c.b16 %v838, %v837
    %855 = vmatpush.bf16.msra.mxu0 %v846
    %856 = vmatpush.bf16.msra.mxu0 %v845
    %857 = vmatpush.bf16.msra.mxu0 %v844
    %858 = vmatpush.bf16.msra.mxu0 %v843
    %859 = vmatpush.bf16.msra.mxu0 %v842
    %860 = vmatpush.bf16.msra.mxu0 %v841
    %861 = vmatpush.bf16.msra.mxu0 %v840
    %862 = vmatpush.bf16.msra.mxu0 %v839
    %863 = vmatmul.bf16.gmra.mxu0 %v709
    %v864 = vpop.f32.mrf.mxu0
    %v865 = vadd.f32 %v804, %v864
    %v866 = vpop.f32.mrf.mxu0
    %867 = vdwg.mxu0
    %s868 = scalar_lea.vmem %s4, 128
    %v869 = vld [vmem:[%s868] sm:$0xf]
    %v870 = vld [vmem:[%s868 + $0x4] sm:$0xf]
    %v871 = vld [vmem:[%s868 + $0x8] sm:$0xf]
    %v872 = vld [vmem:[%s868 + $0xc] sm:$0xf]
    %v873 = vld [vmem:[%s868 + $0x10] sm:$0xf]
    %v874 = vld [vmem:[%s868 + $0x14] sm:$0xf]
    %v875 = vld [vmem:[%s868 + $0x18] sm:$0xf]
    %v876 = vld [vmem:[%s868 + $0x1c] sm:$0xf]
    %v877 = vld [vmem:[%s868 + $0x20] sm:$0xf]
    %v878 = vld [vmem:[%s868 + $0x24] sm:$0xf]
    %v879 = vld [vmem:[%s868 + $0x28] sm:$0xf]
    %v880 = vld [vmem:[%s868 + $0x2c] sm:$0xf]
    %v881 = vld [vmem:[%s868 + $0x30] sm:$0xf]
    %v882 = vld [vmem:[%s868 + $0x34] sm:$0xf]
    %v883 = vld [vmem:[%s868 + $0x38] sm:$0xf]
    %v884 = vld [vmem:[%s868 + $0x3c] sm:$0xf]
    %v885 = vrot.slane %v709, 2
    %v903 = vunpack.c.l.b16 %v869
    %v904 = vunpack.c.l.b16 %v870
    %v905 = vunpack.c.l.b16 %v871
    %v906 = vunpack.c.l.b16 %v872
    %v907 = vunpack.c.l.b16 %v873
    %v908 = vunpack.c.l.b16 %v874
    %v909 = vunpack.c.l.b16 %v875
    %v910 = vunpack.c.l.b16 %v876
    %v911 = vunpack.c.l.b16 %v877
    %v912 = vunpack.c.l.b16 %v878
    %v913 = vunpack.c.l.b16 %v879
    %v914 = vunpack.c.l.b16 %v880
    %v915 = vunpack.c.l.b16 %v881
    %v916 = vunpack.c.l.b16 %v882
    %v917 = vunpack.c.l.b16 %v883
    %v918 = vunpack.c.l.b16 %v884
    %v919 = vpack.c.b16 %v904, %v903
    %v920 = vpack.c.b16 %v906, %v905
    %v921 = vpack.c.b16 %v908, %v907
    %v922 = vpack.c.b16 %v910, %v909
    %v923 = vpack.c.b16 %v912, %v911
    %v924 = vpack.c.b16 %v914, %v913
    %v925 = vpack.c.b16 %v916, %v915
    %v926 = vpack.c.b16 %v918, %v917
    %935 = vmatpush.bf16.msra.mxu0 %v926
    %936 = vmatpush.bf16.msra.mxu0 %v925
    %937 = vmatpush.bf16.msra.mxu0 %v924
    %938 = vmatpush.bf16.msra.mxu0 %v923
    %939 = vmatpush.bf16.msra.mxu0 %v922
    %940 = vmatpush.bf16.msra.mxu0 %v921
    %941 = vmatpush.bf16.msra.mxu0 %v920
    %942 = vmatpush.bf16.msra.mxu0 %v919
    %943 = vmatmul.bf16.gmra.mxu0 %v885
    %v944 = vpop.f32.mrf.mxu0
    %v945 = vadd.f32 0.0, %v944
    %v946 = vpop.f32.mrf.mxu0
    %947 = vdwg.mxu0
    %v948 = vadd.f32 %v865, %v945
    %s949 = scalar_lea.vmem %s4, 192
    %v950 = vld [vmem:[%s949] sm:$0xf]
    %v951 = vld [vmem:[%s949 + $0x4] sm:$0xf]
    %v952 = vld [vmem:[%s949 + $0x8] sm:$0xf]
    %v953 = vld [vmem:[%s949 + $0xc] sm:$0xf]
    %v954 = vld [vmem:[%s949 + $0x10] sm:$0xf]
    %v955 = vld [vmem:[%s949 + $0x14] sm:$0xf]
    %v956 = vld [vmem:[%s949 + $0x18] sm:$0xf]
    %v957 = vld [vmem:[%s949 + $0x1c] sm:$0xf]
    %v958 = vld [vmem:[%s949 + $0x20] sm:$0xf]
    %v959 = vld [vmem:[%s949 + $0x24] sm:$0xf]
    %v960 = vld [vmem:[%s949 + $0x28] sm:$0xf]
    %v961 = vld [vmem:[%s949 + $0x2c] sm:$0xf]
    %v962 = vld [vmem:[%s949 + $0x30] sm:$0xf]
    %v963 = vld [vmem:[%s949 + $0x34] sm:$0xf]
    %v964 = vld [vmem:[%s949 + $0x38] sm:$0xf]
    %v965 = vld [vmem:[%s949 + $0x3c] sm:$0xf]
    %v966 = vrot.slane %v709, 3
    %v984 = vunpack.c.l.b16 %v950
    %v985 = vunpack.c.l.b16 %v951
    %v986 = vunpack.c.l.b16 %v952
    %v987 = vunpack.c.l.b16 %v953
    %v988 = vunpack.c.l.b16 %v954
    %v989 = vunpack.c.l.b16 %v955
    %v990 = vunpack.c.l.b16 %v956
    %v991 = vunpack.c.l.b16 %v957
    %v992 = vunpack.c.l.b16 %v958
    %v993 = vunpack.c.l.b16 %v959
    %v994 = vunpack.c.l.b16 %v960
    %v995 = vunpack.c.l.b16 %v961
    %v996 = vunpack.c.l.b16 %v962
    %v997 = vunpack.c.l.b16 %v963
    %v998 = vunpack.c.l.b16 %v964
    %v999 = vunpack.c.l.b16 %v965
    %v1000 = vpack.c.b16 %v985, %v984
    %v1001 = vpack.c.b16 %v987, %v986
    %v1002 = vpack.c.b16 %v989, %v988
    %v1003 = vpack.c.b16 %v991, %v990
    %v1004 = vpack.c.b16 %v993, %v992
    %v1005 = vpack.c.b16 %v995, %v994
    %v1006 = vpack.c.b16 %v997, %v996
    %v1007 = vpack.c.b16 %v999, %v998
    %1016 = vmatpush.bf16.msra.mxu0 %v1007
    %1017 = vmatpush.bf16.msra.mxu0 %v1006
    %1018 = vmatpush.bf16.msra.mxu0 %v1005
    %1019 = vmatpush.bf16.msra.mxu0 %v1004
    %1020 = vmatpush.bf16.msra.mxu0 %v1003
    %1021 = vmatpush.bf16.msra.mxu0 %v1002
    %1022 = vmatpush.bf16.msra.mxu0 %v1001
    %1023 = vmatpush.bf16.msra.mxu0 %v1000
    %1024 = vmatmul.bf16.gmra.mxu0 %v966
    %v1025 = vpop.f32.mrf.mxu0
    %v1026 = vadd.f32 0.0, %v1025
    %v1027 = vpop.f32.mrf.mxu0
    %1028 = vdwg.mxu0
    %v1029 = vadd.f32 %v948, %v1026
    %v1030 = vld [vmem:[%s5] sm:$0x1]
    %v1032 = vperm.slane %v1030, 0
    %v1034 = vadd.f32 %v1029, %v1032
    %1035 = vst [vmem:[#allocation2] sm:$0x3] %v1034
    // Predicated region
    $region26: #{dqn_forward.5} parent=1 // pred_check
      _
    $region27: #{dqn_forward.5} parent=1 // pred_check_branch
      %1037 = sbr.rel (0) target = $region29
    $region28: #{dqn_forward.5} parent=1 // pred_region
      %1039 = vsyncadd [#allocation3], 0
      %s1041 = sshll.u32 [#allocation2], 4
      %s1042 = int_to_ptr.vmem [resolvable:$true] %s1041
      %s1043 = sshll.u32 %s6, 4
      %s1044 = int_to_ptr.hbm [resolvable:$true] %s1043
      %1046 = dma.vmem_to_hbm [thread:$0]  %s1042, 32, %s1044, [#allocation3]
    $region29: #{dqn_forward.5} parent=1 // pred_fallthru
      _
    // Predicated region
    $region30: #{dqn_forward.5} parent=1 // pred_check
      _
    $region31: #{dqn_forward.5} parent=1 // pred_check_branch
      %1048 = sbr.rel (0) target = $region33
    $region32: #{dqn_forward.5} parent=1 // pred_region
      %1050 = dma.done [#allocation3], 32
    $region33: #{dqn_forward.5} parent=1 // pred_fallthru
      _
    %1051 = vsyncpa [#allocation3], 1

</llo_original>
